<compile_context>
chip_gen: v5e
topology: v5e:2x2
jax: 0.10.0
libtpu: 0.0.40
codegen_flags: <defaults>
</compile_context>

<pallas_src>
import jax
import jax.numpy as jnp
from jax.experimental import pallas as pl
from jax.experimental.pallas import tpu as pltpu


def _round_up(n, m):
    return ((n + m - 1) // m) * m


def mlp_kernel(x_ref, w1_ref, b1_ref, w2_ref, b2_ref, o_ref):
    # layer1: x @ W1 + b1  (MXU matmul, f32 accumulate; bias broadcasts over rows)
    h = jnp.dot(x_ref[...], w1_ref[...], preferred_element_type=jnp.float32)
    h = h + b1_ref[...].astype(jnp.float32)
    # ReLU on the f32 accumulator (VPU elementwise)
    h = jnp.maximum(h, 0.0)
    # layer2: h @ W2 + b2
    y = jnp.dot(h.astype(w2_ref.dtype), w2_ref[...],
                preferred_element_type=jnp.float32)
    y = y + b2_ref[...].astype(jnp.float32)
    o_ref[...] = y.astype(o_ref.dtype)


def mlp_forward(x, w1, b1, w2, b2, *, block_batch=256):
    """x: (B, F); w1: (F, H); b1: (1, H); w2: (H, F); b2: (1, F) -> (B, F)."""
    B, F = x.shape
    F_in, H = w1.shape
    assert F_in == F and w2.shape == (H, F)
    assert b1.shape == (1, H) and b2.shape == (1, F)

    # ---- batch tiling: TB rows per grid step, 8-sublane aligned --------------
    TB = min(block_batch, _round_up(B, 8))
    TB = _round_up(TB, 8)
    B_pad = _round_up(B, TB)
    x_in = x if B_pad == B else jnp.pad(x, ((0, B_pad - B), (0, 0)))
    grid = (B_pad // TB,)

    # ---- scheduling hints ----------------------------------------------------
    bytes_accessed = (x_in.size * x_in.dtype.itemsize
                      + w1.size * w1.dtype.itemsize + b1.size * b1.dtype.itemsize
                      + w2.size * w2.dtype.itemsize + b2.size * b2.dtype.itemsize
                      + B_pad * F * x.dtype.itemsize)
    cost = pl.CostEstimate(flops=4 * B_pad * F * H,      # two matmuls: 2*B*F*H each
                           transcendentals=0,
                           bytes_accessed=bytes_accessed)

    # Resident weights/biases + double-buffered x/out tiles + f32 intermediates.
    weight_bytes = (w1.size * w1.dtype.itemsize + w2.size * w2.dtype.itemsize
                    + b1.size * b1.dtype.itemsize + b2.size * b2.dtype.itemsize)
    tile_bytes = 2 * 2 * TB * F * x.dtype.itemsize        # double-buffered x + out
    hidden_bytes = 2 * TB * H * 4                          # f32 hidden activations
    vmem_limit = int(min(max(2 * weight_bytes + tile_bytes + hidden_bytes + (4 << 20),
                             32 << 20),
                         64 << 20))                        # stay portable to v7x

    out = pl.pallas_call(
        mlp_kernel,
        out_shape=jax.ShapeDtypeStruct((B_pad, F), x.dtype),
        grid_spec=pltpu.PrefetchScalarGridSpec(
            num_scalar_prefetch=0,
            grid=grid,
            in_specs=[
                pl.BlockSpec((TB, F), lambda i: (i, 0)),   # streamed activation tile
                pl.BlockSpec((F, H), lambda i: (0, 0)),    # W1: VMEM-resident
                pl.BlockSpec((1, H), lambda i: (0, 0)),    # b1: VMEM-resident
                pl.BlockSpec((H, F), lambda i: (0, 0)),    # W2: VMEM-resident
                pl.BlockSpec((1, F), lambda i: (0, 0)),    # b2: VMEM-resident
            ],
            out_specs=pl.BlockSpec((TB, F), lambda i: (i, 0)),
        ),
        compiler_params=pltpu.CompilerParams(
            dimension_semantics=("parallel",),             # shard tiles across TCs on v7x
            vmem_limit_bytes=vmem_limit,
        ),
        cost_estimate=cost,
    )(x_in, w1, b1, w2, b2)

    return out if B_pad == B else out[:B]


def init_mlp_params(key, feature_size, feature_multiplier=1, dtype=jnp.float32):
    """Deterministic init mimicking torch.nn.Linear's uniform(-1/sqrt(fan_in), ...).

    Weights are returned pre-transposed as [in, out] for the kernel layout.
    """
    hidden = feature_size * feature_multiplier
    k1, k2, k3, k4 = jax.random.split(key, 4)
    bound1 = 1.0 / (feature_size ** 0.5)
    bound2 = 1.0 / (hidden ** 0.5)
    w1 = jax.random.uniform(k1, (feature_size, hidden), dtype, -bound1, bound1)
    b1 = jax.random.uniform(k2, (1, hidden), dtype, -bound1, bound1)
    w2 = jax.random.uniform(k3, (hidden, feature_size), dtype, -bound2, bound2)
    b2 = jax.random.uniform(k4, (1, feature_size), dtype, -bound2, bound2)
    return w1, b1, w2, b2


if __name__ == "__main__":
    key = jax.random.PRNGKey(0)
    kx, kp = jax.random.split(key)

    batch = 384               # not a multiple of the 256-row tile -> exercises tiling + padding
    feature_size = 128        # lane-dense (multiple of 128)
    feature_multiplier = 4    # hidden = 512

    x = jax.random.normal(kx, (batch, feature_size), jnp.float32)
    w1, b1, w2, b2 = init_mlp_params(kp, feature_size, feature_multiplier)

    out = mlp_forward(x, w1, b1, w2, b2, block_batch=256)
    out = jax.block_until_ready(out)

    # Pure-JAX reference check of the fused kernel.
    ref = jnp.maximum(x @ w1 + b1, 0.0) @ w2 + b2
    assert out.shape == (batch, feature_size)
    assert jnp.allclose(out, ref, atol=1e-3, rtol=1e-3), float(jnp.max(jnp.abs(out - ref)))

    print("KERNEL_OK")
</pallas_src>

<mosaic_0001>
module attributes {stable_mosaic.version = 11 : i64} {
  func.func @mlp_kernel(%arg0: i32, %arg1: memref<256x128xf32, #tpu.memory_space<vmem>>, %arg2: memref<128x512xf32, #tpu.memory_space<vmem>>, %arg3: memref<1x512xf32, #tpu.memory_space<vmem>>, %arg4: memref<512x128xf32, #tpu.memory_space<vmem>>, %arg5: memref<1x128xf32, #tpu.memory_space<vmem>>, %arg6: memref<256x128xf32, #tpu.memory_space<vmem>>) attributes {dimension_semantics = [#tpu.dimension_semantics<parallel>], iteration_bounds = array<i64: 2>, scalar_prefetch = 0 : i64, scratch_operands = 0 : i64, tpu.core_type = #tpu.core_type<tc>, window_params = [{transform_indices = @transform_0, window_bounds = array<i64: 256, 128>}, {pipeline_mode = #tpu.pipeline_mode<synchronous>, transform_indices = @transform_1, window_bounds = array<i64: 128, 512>}, {pipeline_mode = #tpu.pipeline_mode<synchronous>, transform_indices = @transform_2, window_bounds = array<i64: 1, 512>}, {pipeline_mode = #tpu.pipeline_mode<synchronous>, transform_indices = @transform_3, window_bounds = array<i64: 512, 128>}, {pipeline_mode = #tpu.pipeline_mode<synchronous>, transform_indices = @transform_4, window_bounds = array<i64: 1, 128>}, {transform_indices = @transform_5, window_bounds = array<i64: 256, 128>}]} {
    %c0 = arith.constant 0 : index
    %c0_0 = arith.constant 0 : index
    %0 = vector.load %arg1[%c0, %c0_0] : memref<256x128xf32, #tpu.memory_space<vmem>>, vector<256x128xf32>
    %c0_1 = arith.constant 0 : index
    %c0_2 = arith.constant 0 : index
    %1 = vector.load %arg2[%c0_1, %c0_2] : memref<128x512xf32, #tpu.memory_space<vmem>>, vector<128x512xf32>
    %cst = arith.constant dense<0.000000e+00> : vector<256x512xf32>
    %2 = tpu.matmul %0, %1, %cst {dimension_numbers = #tpu.dot_dimension_numbers<[1], [0], [0], [1], [0, 0, 1, 1], [], []>} : vector<256x128xf32>, vector<128x512xf32>, vector<256x512xf32> -> vector<256x512xf32>
    %c0_3 = arith.constant 0 : index
    %c0_4 = arith.constant 0 : index
    %3 = vector.load %arg3[%c0_3, %c0_4] : memref<1x512xf32, #tpu.memory_space<vmem>>, vector<1x512xf32>
    %4 = vector.broadcast %3 : vector<1x512xf32> to vector<256x512xf32>
    %5 = arith.addf %2, %4 : vector<256x512xf32>
    %cst_5 = arith.constant 0.000000e+00 : f32
    %6 = vector.broadcast %cst_5 : f32 to vector<256x512xf32>
    %7 = arith.maximumf %5, %6 : vector<256x512xf32>
    %c0_6 = arith.constant 0 : index
    %c0_7 = arith.constant 0 : index
    %8 = vector.load %arg4[%c0_6, %c0_7] : memref<512x128xf32, #tpu.memory_space<vmem>>, vector<512x128xf32>
    %cst_8 = arith.constant dense<0.000000e+00> : vector<256x128xf32>
    %9 = tpu.matmul %7, %8, %cst_8 {dimension_numbers = #tpu.dot_dimension_numbers<[1], [0], [0], [1], [0, 0, 1, 1], [], []>} : vector<256x512xf32>, vector<512x128xf32>, vector<256x128xf32> -> vector<256x128xf32>
    %c0_9 = arith.constant 0 : index
    %c0_10 = arith.constant 0 : index
    %10 = vector.load %arg5[%c0_9, %c0_10] : memref<1x128xf32, #tpu.memory_space<vmem>>, vector<1x128xf32>
    %11 = vector.broadcast %10 : vector<1x128xf32> to vector<256x128xf32>
    %12 = arith.addf %9, %11 : vector<256x128xf32>
    %c0_11 = arith.constant 0 : index
    %c0_12 = arith.constant 0 : index
    %13 = vector.load %arg6[%c0_11, %c0_12] : memref<256x128xf32, #tpu.memory_space<vmem>>, vector<256x128xf32>
    tpu.vector_store %arg6[%c0_11, %c0_12], %12 {strides = array<i32>} : memref<256x128xf32, #tpu.memory_space<vmem>>, vector<256x128xf32>,
    return
  }
  func.func @transform_0(%arg0: i32) -> (i32, i32) {
    %c0_i32 = arith.constant 0 : i32
    %c0_i32_0 = arith.constant 0 : i32
    return %arg0, %c0_i32 : i32, i32
  }
  func.func @transform_1(%arg0: i32) -> (i32, i32) {
    %c0_i32 = arith.constant 0 : i32
    %c0_i32_0 = arith.constant 0 : i32
    %c0_i32_1 = arith.constant 0 : i32
    return %c0_i32, %c0_i32_0 : i32, i32
  }
  func.func @transform_2(%arg0: i32) -> (i32, i32) {
    %c0_i32 = arith.constant 0 : i32
    %c0_i32_0 = arith.constant 0 : i32
    %c0_i32_1 = arith.constant 0 : i32
    return %c0_i32, %c0_i32_0 : i32, i32
  }
  func.func @transform_3(%arg0: i32) -> (i32, i32) {
    %c0_i32 = arith.constant 0 : i32
    %c0_i32_0 = arith.constant 0 : i32
    %c0_i32_1 = arith.constant 0 : i32
    return %c0_i32, %c0_i32_0 : i32, i32
  }
  func.func @transform_4(%arg0: i32) -> (i32, i32) {
    %c0_i32 = arith.constant 0 : i32
    %c0_i32_0 = arith.constant 0 : i32
    %c0_i32_1 = arith.constant 0 : i32
    return %c0_i32, %c0_i32_0 : i32, i32
  }
  func.func @transform_5(%arg0: i32) -> (i32, i32) {
    %c0_i32 = arith.constant 0 : i32
    %c0_i32_0 = arith.constant 0 : i32
    return %arg0, %c0_i32 : i32, i32
  }
}

</mosaic_0001>

<llo_original>
// kernel: tpu_custom_call.1
$region0: #{tpu_custom_call.1}
  #allocation0 [shape = 'u32[]', space=smem, size = 0x4, offset = 0x4, fixed_abs, tag = 'smem constant byte address 0x4 - core index']
  #allocation1 [shape = 'u32[72,128]{1,0:T(1,128)}', space=vmem, size = 0x9000, scoped, tag = 'internal scratch']
  %s0 = inlined_call_operand.hbm [shape: f32[512,128], index: 0, kind: input, shape index: {}]
  %s1 = inlined_call_operand.hbm [shape: f32[128,512], index: 1, kind: input, shape index: {}]
  %s2 = inlined_call_operand.hbm [shape: f32[1,512], index: 2, kind: input, shape index: {}]
  %s3 = inlined_call_operand.hbm [shape: f32[512,128], index: 3, kind: input, shape index: {}]
  %s4 = inlined_call_operand.vmem [shape: f32[1,128], index: 4, kind: input, shape index: {}]
  %s5 = inlined_call_operand.hbm [shape: f32[512,128], index: 5, kind: output, shape index: {}]
  %s6 = sld [smem:[#allocation0]]
  $region69: #{tpu_custom_call.1} parent=0
    _
  %s8 = ssub.s32 1, %s6
  %s9 = scalar_select 0, %s8, %s6
  $region1: #{tpu_custom_call.1} parent=0
    #allocation2 [shape = 'u8[262144]{0}', space=vmem, size = 0x40000, scoped, tag = 'input window, operand 0']
    #allocation3 [shape = 's32[2]{0}', space=sflag, size = 0x8, scoped, tag = 'scoped memory for tpu_custom_call.1']
    #allocation4 [shape = 's32[2]{0}', space=sflag, size = 0x8, scoped, tag = 'scoped memory for tpu_custom_call.1']
    #allocation5 [shape = 'u8[262144]{0}', space=vmem, size = 0x40000, scoped, tag = 'input window, operand 1, single buffered']
    #allocation6 [shape = 's32[1]{0}', space=sflag, size = 0x4, scoped, tag = 'scoped memory for tpu_custom_call.1']
    #allocation7 [shape = 'u8[2048]{0}', space=vmem, size = 0x800, scoped, tag = 'input window, operand 2, single buffered']
    #allocation8 [shape = 'u8[262144]{0}', space=vmem, size = 0x40000, scoped, tag = 'input window, operand 3, single buffered']
    #allocation9 [shape = 's32[1]{0}', space=sflag, size = 0x4, scoped, tag = 'scoped memory for tpu_custom_call.1']
    #allocation10 [shape = 'u8[262144]{0}', space=vmem, size = 0x40000, scoped, tag = 'output window, operand 0']
    %10 = vsyncpa [#allocation3], 0
    %s11 = scalar_lea.sflag [#allocation3], 1
    %12 = vsyncpa %s11, 0
    %13 = vsyncpa [#allocation6], 0
    %14 = vsyncpa [#allocation9], 0
    %15 = vsyncpa [#allocation4], 0
    %s16 = scalar_lea.sflag [#allocation4], 1
    %17 = vsyncpa %s16, 0
    loop: start=0, step=1, limit=4
    $region2: #{tpu_custom_call.1} parent=1 // loop_pre_header
      _
    $region3: #{tpu_custom_call.1} parent=1 // loop_header
      %s19 = sphi 0, %s23
      %p20 = scmp.ge.s32.totalorder %s19, 4
      %s29 = sphi 0, %s31
      %s32 = sphi 0, %s29
      %s33 = sphi 0, %s32
      %s49 = sphi 0, %s33
      %s53 = sphi 0, %s53
      %s55 = sphi 0, %s53
      %s56 = sphi 0, %s55
      %s70 = sphi 0, %s56
      %s74 = sphi 0, %s74
      %s76 = sphi 0, %s74
      %s77 = sphi 0, %s76
      %s91 = sphi 0, %s77
      %s95 = sphi 0, %s95
      %s97 = sphi 0, %s95
      %s98 = sphi 0, %s97
      %s112 = sphi 0, %s98
      %s116 = sphi 0, %s116
      %s118 = sphi 0, %s116
      %s119 = sphi 0, %s118
      %s133 = sphi 0, %s119
      %s139 = sphi 0, %s141
      %s142 = sphi 0, %s139
      %s143 = sphi 0, %s142
      %s159 = sphi 0, %s143
    $region4: #{tpu_custom_call.1} parent=1 // loop_header_branch
      %22 = sbr.rel (%p20) target = $region8
    $region5: #{tpu_custom_call.1} parent=1 // loop_body
      %s24 = ssub.s32 %s19, 1
      %s25 = ssub.s32 %s19, 2
      %s26 = sadd.s32 %s19, 1
      %s27 = ssub.s32 %s19, %s26
      %p28 = scmp.eq.s32.totalorder %s27, 0
      %s30 = sadd.s32 %s29, 1
      %s31 = scalar_select %p28, %s29, %s30
      %p34 = pneg %p28
      %p35 = scmp.eq.s32.totalorder %s19, 1
      %p36 = por %p34, %p35
      %p37 = scmp.ne.s32.totalorder %s29, %s32
      %p38 = scmp.eq.s32.totalorder %s19, 0
      %p39 = por %p37, %p38
      %p40 = scmp.ne.s32.totalorder %s29, %s32
      %p41 = scmp.eq.s32.totalorder %s24, 1
      %p42 = por %p40, %p41
      %p43 = scmp.ne.s32.totalorder %s32, %s33
      %p44 = scmp.eq.s32.totalorder %s24, 0
      %p45 = por %p43, %p44
      %p46 = scmp.ne.s32.totalorder %s32, %s33
      %p47 = scmp.eq.s32.totalorder %s25, 1
      %p48 = por %p46, %p47
      %p50 = scmp.ne.s32.totalorder %s33, %s49
      %p51 = scmp.eq.s32.totalorder %s25, 0
      %p52 = por %p50, %p51
      %s54 = sadd.s32 %s53, 1
      %p57 = scmp.eq.s32.totalorder %s19, 1
      %p58 = scmp.ne.s32.totalorder %s53, %s55
      %p59 = scmp.eq.s32.totalorder %s19, 0
      %p60 = por %p58, %p59
      %p61 = scmp.ne.s32.totalorder %s53, %s55
      %p62 = scmp.eq.s32.totalorder %s24, 1
      %p63 = por %p61, %p62
      %p64 = scmp.ne.s32.totalorder %s55, %s56
      %p65 = scmp.eq.s32.totalorder %s24, 0
      %p66 = por %p64, %p65
      %p67 = scmp.ne.s32.totalorder %s55, %s56
      %p68 = scmp.eq.s32.totalorder %s25, 1
      %p69 = por %p67, %p68
      %p71 = scmp.ne.s32.totalorder %s56, %s70
      %p72 = scmp.eq.s32.totalorder %s25, 0
      %p73 = por %p71, %p72
      %s75 = sadd.s32 %s74, 1
      %p78 = scmp.eq.s32.totalorder %s19, 1
      %p79 = scmp.ne.s32.totalorder %s74, %s76
      %p80 = scmp.eq.s32.totalorder %s19, 0
      %p81 = por %p79, %p80
      %p82 = scmp.ne.s32.totalorder %s74, %s76
      %p83 = scmp.eq.s32.totalorder %s24, 1
      %p84 = por %p82, %p83
      %p85 = scmp.ne.s32.totalorder %s76, %s77
      %p86 = scmp.eq.s32.totalorder %s24, 0
      %p87 = por %p85, %p86
      %p88 = scmp.ne.s32.totalorder %s76, %s77
      %p89 = scmp.eq.s32.totalorder %s25, 1
      %p90 = por %p88, %p89
      %p92 = scmp.ne.s32.totalorder %s77, %s91
      %p93 = scmp.eq.s32.totalorder %s25, 0
      %p94 = por %p92, %p93
      %s96 = sadd.s32 %s95, 1
      %p99 = scmp.eq.s32.totalorder %s19, 1
      %p100 = scmp.ne.s32.totalorder %s95, %s97
      %p101 = scmp.eq.s32.totalorder %s19, 0
      %p102 = por %p100, %p101
      %p103 = scmp.ne.s32.totalorder %s95, %s97
      %p104 = scmp.eq.s32.totalorder %s24, 1
      %p105 = por %p103, %p104
      %p106 = scmp.ne.s32.totalorder %s97, %s98
      %p107 = scmp.eq.s32.totalorder %s24, 0
      %p108 = por %p106, %p107
      %p109 = scmp.ne.s32.totalorder %s97, %s98
      %p110 = scmp.eq.s32.totalorder %s25, 1
      %p111 = por %p109, %p110
      %p113 = scmp.ne.s32.totalorder %s98, %s112
      %p114 = scmp.eq.s32.totalorder %s25, 0
      %p115 = por %p113, %p114
      %s117 = sadd.s32 %s116, 1
      %p120 = scmp.eq.s32.totalorder %s19, 1
      %p121 = scmp.ne.s32.totalorder %s116, %s118
      %p122 = scmp.eq.s32.totalorder %s19, 0
      %p123 = por %p121, %p122
      %p124 = scmp.ne.s32.totalorder %s116, %s118
      %p125 = scmp.eq.s32.totalorder %s24, 1
      %p126 = por %p124, %p125
      %p127 = scmp.ne.s32.totalorder %s118, %s119
      %p128 = scmp.eq.s32.totalorder %s24, 0
      %p129 = por %p127, %p128
      %p130 = scmp.ne.s32.totalorder %s118, %s119
      %p131 = scmp.eq.s32.totalorder %s25, 1
      %p132 = por %p130, %p131
      %p134 = scmp.ne.s32.totalorder %s119, %s133
      %p135 = scmp.eq.s32.totalorder %s25, 0
      %p136 = por %p134, %p135
      %s137 = ssub.s32 %s19, %s26
      %p138 = scmp.eq.s32.totalorder %s137, 0
      %s140 = sadd.s32 %s139, 1
      %s141 = scalar_select %p138, %s139, %s140
      %p144 = pneg %p138
      %p145 = scmp.eq.s32.totalorder %s19, 1
      %p146 = por %p144, %p145
      %p147 = scmp.ne.s32.totalorder %s139, %s142
      %p148 = scmp.eq.s32.totalorder %s19, 0
      %p149 = por %p147, %p148
      %p150 = scmp.ne.s32.totalorder %s139, %s142
      %p151 = scmp.eq.s32.totalorder %s24, 1
      %p152 = por %p150, %p151
      %p153 = scmp.ne.s32.totalorder %s142, %s143
      %p154 = scmp.eq.s32.totalorder %s24, 0
      %p155 = por %p153, %p154
      %p156 = scmp.ne.s32.totalorder %s142, %s143
      %p157 = scmp.eq.s32.totalorder %s25, 1
      %p158 = por %p156, %p157
      %p160 = scmp.ne.s32.totalorder %s143, %s159
      %p161 = scmp.eq.s32.totalorder %s25, 0
      %p162 = por %p160, %p161
      %p163 = scmp.le.s32.totalorder 1, %s19
      %p164 = scmp.lt.s32.totalorder %s19, 3
      %p165 = pnand %p163, %p164
      %p166 = pneg %p165
      // Predicated region
      $region9: #{tpu_custom_call.1} parent=5 // pred_check
        _
      $region10: #{tpu_custom_call.1} parent=5 // pred_check_branch
        %168 = sbr.rel (%p165) target = $region12
      $region11: #{tpu_custom_call.1} parent=5 // pred_region
        %s169 = ssub.s32 %s19, 1
        // Predicated region
        $region13: #{tpu_custom_call.1} parent=11 // pred_check
          %p170 = pneg %p66
        $region14: #{tpu_custom_call.1} parent=11 // pred_check_branch
          %172 = sbr.rel (%p170) target = $region16
        $region15: #{tpu_custom_call.1} parent=11 // pred_region
          %174 = vsyncadd [#allocation6], 0
          %s175 = sshll.u32 %s1, 4
          %s176 = int_to_ptr.hbm [resolvable:$true] %s175
          %s177 = sshll.u32 [#allocation5], 4
          %s178 = int_to_ptr.vmem [resolvable:$true] %s177
          %183 = dma.hbm_to_vmem [thread:$0]  %s176, 8192, %s178, [#allocation6], 512, 512, 32
        $region16: #{tpu_custom_call.1} parent=11 // pred_fallthru
          _
        // Predicated region
        $region17: #{tpu_custom_call.1} parent=11 // pred_check
          %p184 = pneg %p87
        $region18: #{tpu_custom_call.1} parent=11 // pred_check_branch
          %186 = sbr.rel (%p184) target = $region20
        $region19: #{tpu_custom_call.1} parent=11 // pred_region
          %188 = vsyncadd [#allocation6], 0
          %s190 = sshll.u32 %s2, 4
          %s191 = int_to_ptr.hbm [resolvable:$true] %s190
          %s192 = sshll.u32 [#allocation7], 4
          %s193 = int_to_ptr.vmem [resolvable:$true] %s192
          %195 = dma.hbm_to_vmem [thread:$0]  %s191, 64, %s193, [#allocation6]
        $region20: #{tpu_custom_call.1} parent=11 // pred_fallthru
          _
        // Predicated region
        $region21: #{tpu_custom_call.1} parent=11 // pred_check
          %p196 = pneg %p108
        $region22: #{tpu_custom_call.1} parent=11 // pred_check_branch
          %198 = sbr.rel (%p196) target = $region24
        $region23: #{tpu_custom_call.1} parent=11 // pred_region
          %200 = vsyncadd [#allocation9], 0
          %s201 = sshll.u32 %s3, 4
          %s202 = int_to_ptr.hbm [resolvable:$true] %s201
          %s203 = sshll.u32 [#allocation8], 4
          %s204 = int_to_ptr.vmem [resolvable:$true] %s203
          %209 = dma.hbm_to_vmem [thread:$0]  %s202, 8192, %s204, [#allocation9], 128, 128, 8
        $region24: #{tpu_custom_call.1} parent=11 // pred_fallthru
          _
        // Predicated region
        $region25: #{tpu_custom_call.1} parent=11 // pred_check
          %p210 = pneg %p129
        $region26: #{tpu_custom_call.1} parent=11 // pred_check_branch
          %212 = sbr.rel (%p210) target = $region28
        $region27: #{tpu_custom_call.1} parent=11 // pred_region
          _
        $region28: #{tpu_custom_call.1} parent=11 // pred_fallthru
          _
      $region12: #{tpu_custom_call.1} parent=5 // pred_fallthru
        _
      %p213 = scmp.lt.s32.totalorder %s19, 2
      // Predicated region
      $region29: #{tpu_custom_call.1} parent=5 // pred_check
        %p214 = pneg %p213
      $region30: #{tpu_custom_call.1} parent=5 // pred_check_branch
        %216 = sbr.rel (%p214) target = $region32
      $region31: #{tpu_custom_call.1} parent=5 // pred_region
        // Predicated region
        $region33: #{tpu_custom_call.1} parent=31 // pred_check
          %p217 = pneg %p39
        $region34: #{tpu_custom_call.1} parent=31 // pred_check_branch
          %219 = sbr.rel (%p217) target = $region36
        $region35: #{tpu_custom_call.1} parent=31 // pred_region
          %s220 = sand.u32 %s29, 1
          %s221 = scalar_lea.sflag [#allocation3], %s220
          %s222 = sand.u32 %s29, 1
          %s223 = smul.addr %s222, 256
          %s224 = scalar_lea.vmem [#allocation2], %s223
          %s225 = smul.u32 32, %s19
          %227 = vsyncadd %s221, 0
          %s228 = smul.addr %s225, 8
          %s229 = scalar_lea.hbm %s0, %s228
          %s230 = sshll.u32 %s229, 4
          %s231 = int_to_ptr.hbm [resolvable:$true] %s230
          %s232 = sshll.u32 %s224, 4
          %s233 = int_to_ptr.vmem [resolvable:$true] %s232
          %238 = dma.hbm_to_vmem [thread:$0]  %s231, 4096, %s233, %s221, 128, 128, 8
        $region36: #{tpu_custom_call.1} parent=31 // pred_fallthru
          _
      $region32: #{tpu_custom_call.1} parent=5 // pred_fallthru
        _
      %p239 = scmp.le.s32.totalorder 1, %s19
      %p240 = scmp.lt.s32.totalorder %s19, 3
      %p241 = pnand %p239, %p240
      %p242 = pneg %p241
      // Predicated region
      $region37: #{tpu_custom_call.1} parent=5 // pred_check
        _
      $region38: #{tpu_custom_call.1} parent=5 // pred_check_branch
        %244 = sbr.rel (%p241) target = $region40
      $region39: #{tpu_custom_call.1} parent=5 // pred_region
        %s245 = ssub.s32 %s19, 1
        %s246 = sand.u32 %s32, 1
        %s247 = scalar_lea.sflag [#allocation3], %s246
        %s248 = sand.u32 %s32, 1
        %s249 = smul.addr %s248, 256
        %s250 = scalar_lea.vmem [#allocation2], %s249
        // Predicated region
        $region41: #{tpu_custom_call.1} parent=39 // pred_check
          %p251 = pneg %p45
        $region42: #{tpu_custom_call.1} parent=39 // pred_check_branch
          %253 = sbr.rel (%p251) target = $region44
        $region43: #{tpu_custom_call.1} parent=39 // pred_region
          %255 = dma.done %s247, 4096
        $region44: #{tpu_custom_call.1} parent=39 // pred_fallthru
          _
        // Predicated region
        $region45: #{tpu_custom_call.1} parent=39 // pred_check
          %p256 = pneg %p66
        $region46: #{tpu_custom_call.1} parent=39 // pred_check_branch
          %258 = sbr.rel (%p256) target = $region48
        $region47: #{tpu_custom_call.1} parent=39 // pred_region
          %260 = dma.done [#allocation6], 8192
        $region48: #{tpu_custom_call.1} parent=39 // pred_fallthru
          _
        // Predicated region
        $region49: #{tpu_custom_call.1} parent=39 // pred_check
          %p261 = pneg %p87
        $region50: #{tpu_custom_call.1} parent=39 // pred_check_branch
          %263 = sbr.rel (%p261) target = $region52
        $region51: #{tpu_custom_call.1} parent=39 // pred_region
          %265 = dma.done [#allocation6], 64
        $region52: #{tpu_custom_call.1} parent=39 // pred_fallthru
          _
        // Predicated region
        $region53: #{tpu_custom_call.1} parent=39 // pred_check
          %p266 = pneg %p108
        $region54: #{tpu_custom_call.1} parent=39 // pred_check_branch
          %268 = sbr.rel (%p266) target = $region56
        $region55: #{tpu_custom_call.1} parent=39 // pred_region
          %270 = dma.done [#allocation9], 8192
        $region56: #{tpu_custom_call.1} parent=39 // pred_fallthru
          _
        %s271 = sand.u32 %s32, 1
        %s272 = scalar_lea.sflag [#allocation3], %s271
        %s273 = sand.u32 %s32, 1
        %s274 = smul.addr %s273, 256
        %s275 = scalar_lea.vmem [#allocation2], %s274
        %p276 = pneg %p45
        %p277 = pneg %p42
        %p278 = pneg %p66
        %p279 = pneg %p63
        %p280 = pneg %p87
        %p281 = pneg %p84
        %p282 = pneg %p108
        %p283 = pneg %p105
        %p284 = pneg %p129
        %p285 = pneg %p126
        %p286 = pneg %p155
        %p287 = pneg %p152
        %s288 = sand.u32 %s142, 1
        %s289 = scalar_lea.sflag [#allocation4], %s288
        %s290 = sand.u32 %s142, 1
        %s291 = smul.addr %s290, 256
        %s292 = scalar_lea.vmem [#allocation10], %s291
        %s293 = smul.u32 32, %s24
        %s294 = smul.u32 32, %s24
        %v295 = vld [vmem:[%s250] sm:$0xff]
        %v296 = vld [vmem:[%s250 + $0x8] sm:$0xff]
        %v297 = vld [vmem:[%s250 + $0x10] sm:$0xff]
        %v298 = vld [vmem:[%s250 + $0x18] sm:$0xff]
        %v299 = vld [vmem:[%s250 + $0x20] sm:$0xff]
        %v300 = vld [vmem:[%s250 + $0x28] sm:$0xff]
        %v301 = vld [vmem:[%s250 + $0x30] sm:$0xff]
        %v302 = vld [vmem:[%s250 + $0x38] sm:$0xff]
        %v303 = vld [vmem:[%s250 + $0x40] sm:$0xff]
        %v304 = vld [vmem:[%s250 + $0x48] sm:$0xff]
        %v305 = vld [vmem:[%s250 + $0x50] sm:$0xff]
        %v306 = vld [vmem:[%s250 + $0x58] sm:$0xff]
        %v307 = vld [vmem:[%s250 + $0x60] sm:$0xff]
        %v308 = vld [vmem:[%s250 + $0x68] sm:$0xff]
        %v309 = vld [vmem:[%s250 + $0x70] sm:$0xff]
        %v310 = vld [vmem:[%s250 + $0x78] sm:$0xff]
        %v311 = vld [vmem:[%s250 + $0x80] sm:$0xff]
        %v312 = vld [vmem:[%s250 + $0x88] sm:$0xff]
        %v313 = vld [vmem:[%s250 + $0x90] sm:$0xff]
        %v314 = vld [vmem:[%s250 + $0x98] sm:$0xff]
        %v315 = vld [vmem:[%s250 + $0xa0] sm:$0xff]
        %v316 = vld [vmem:[%s250 + $0xa8] sm:$0xff]
        %v317 = vld [vmem:[%s250 + $0xb0] sm:$0xff]
        %v318 = vld [vmem:[%s250 + $0xb8] sm:$0xff]
        %v319 = vld [vmem:[%s250 + $0xc0] sm:$0xff]
        %v320 = vld [vmem:[%s250 + $0xc8] sm:$0xff]
        %v321 = vld [vmem:[%s250 + $0xd0] sm:$0xff]
        %v322 = vld [vmem:[%s250 + $0xd8] sm:$0xff]
        %v323 = vld [vmem:[%s250 + $0xe0] sm:$0xff]
        %v324 = vld [vmem:[%s250 + $0xe8] sm:$0xff]
        %v325 = vld [vmem:[%s250 + $0xf0] sm:$0xff]
        %v326 = vld [vmem:[%s250 + $0xf8] sm:$0xff]
        %v327 = vld [vmem:[#allocation5] sm:$0xff]
        %v328 = vld [vmem:[#allocation5 + $0x8] sm:$0xff]
        %v329 = vld [vmem:[#allocation5 + $0x10] sm:$0xff]
        %v330 = vld [vmem:[#allocation5 + $0x18] sm:$0xff]
        %v331 = vld [vmem:[#allocation5 + $0x20] sm:$0xff]
        %v332 = vld [vmem:[#allocation5 + $0x28] sm:$0xff]
        %v333 = vld [vmem:[#allocation5 + $0x30] sm:$0xff]
        %v334 = vld [vmem:[#allocation5 + $0x38] sm:$0xff]
        %v335 = vld [vmem:[#allocation5 + $0x40] sm:$0xff]
        %v336 = vld [vmem:[#allocation5 + $0x48] sm:$0xff]
        %v337 = vld [vmem:[#allocation5 + $0x50] sm:$0xff]
        %v338 = vld [vmem:[#allocation5 + $0x58] sm:$0xff]
        %v339 = vld [vmem:[#allocation5 + $0x60] sm:$0xff]
        %v340 = vld [vmem:[#allocation5 + $0x68] sm:$0xff]
        %v341 = vld [vmem:[#allocation5 + $0x70] sm:$0xff]
        %v342 = vld [vmem:[#allocation5 + $0x78] sm:$0xff]
        %v343 = vld [vmem:[#allocation5 + $0x80] sm:$0xff]
        %v344 = vld [vmem:[#allocation5 + $0x88] sm:$0xff]
        %v345 = vld [vmem:[#allocation5 + $0x90] sm:$0xff]
        %v346 = vld [vmem:[#allocation5 + $0x98] sm:$0xff]
        %v347 = vld [vmem:[#allocation5 + $0xa0] sm:$0xff]
        %v348 = vld [vmem:[#allocation5 + $0xa8] sm:$0xff]
        %v349 = vld [vmem:[#allocation5 + $0xb0] sm:$0xff]
        %v350 = vld [vmem:[#allocation5 + $0xb8] sm:$0xff]
        %v351 = vld [vmem:[#allocation5 + $0xc0] sm:$0xff]
        %v352 = vld [vmem:[#allocation5 + $0xc8] sm:$0xff]
        %v353 = vld [vmem:[#allocation5 + $0xd0] sm:$0xff]
        %v354 = vld [vmem:[#allocation5 + $0xd8] sm:$0xff]
        %v355 = vld [vmem:[#allocation5 + $0xe0] sm:$0xff]
        %v356 = vld [vmem:[#allocation5 + $0xe8] sm:$0xff]
        %v357 = vld [vmem:[#allocation5 + $0xf0] sm:$0xff]
        %v358 = vld [vmem:[#allocation5 + $0xf8] sm:$0xff]
        %v359 = vld [vmem:[#allocation5 + $0x100] sm:$0xff]
        %v360 = vld [vmem:[#allocation5 + $0x108] sm:$0xff]
        %v361 = vld [vmem:[#allocation5 + $0x110] sm:$0xff]
        %v362 = vld [vmem:[#allocation5 + $0x118] sm:$0xff]
        %v363 = vld [vmem:[#allocation5 + $0x120] sm:$0xff]
        %v364 = vld [vmem:[#allocation5 + $0x128] sm:$0xff]
        %v365 = vld [vmem:[#allocation5 + $0x130] sm:$0xff]
        %v366 = vld [vmem:[#allocation5 + $0x138] sm:$0xff]
        %v367 = vld [vmem:[#allocation5 + $0x140] sm:$0xff]
        %v368 = vld [vmem:[#allocation5 + $0x148] sm:$0xff]
        %v369 = vld [vmem:[#allocation5 + $0x150] sm:$0xff]
        %v370 = vld [vmem:[#allocation5 + $0x158] sm:$0xff]
        %v371 = vld [vmem:[#allocation5 + $0x160] sm:$0xff]
        %v372 = vld [vmem:[#allocation5 + $0x168] sm:$0xff]
        %v373 = vld [vmem:[#allocation5 + $0x170] sm:$0xff]
        %v374 = vld [vmem:[#allocation5 + $0x178] sm:$0xff]
        %v375 = vld [vmem:[#allocation5 + $0x180] sm:$0xff]
        %v376 = vld [vmem:[#allocation5 + $0x188] sm:$0xff]
        %v377 = vld [vmem:[#allocation5 + $0x190] sm:$0xff]
        %v378 = vld [vmem:[#allocation5 + $0x198] sm:$0xff]
        %v379 = vld [vmem:[#allocation5 + $0x1a0] sm:$0xff]
        %v380 = vld [vmem:[#allocation5 + $0x1a8] sm:$0xff]
        %v381 = vld [vmem:[#allocation5 + $0x1b0] sm:$0xff]
        %v382 = vld [vmem:[#allocation5 + $0x1b8] sm:$0xff]
        %v383 = vld [vmem:[#allocation5 + $0x1c0] sm:$0xff]
        %v384 = vld [vmem:[#allocation5 + $0x1c8] sm:$0xff]
        %v385 = vld [vmem:[#allocation5 + $0x1d0] sm:$0xff]
        %v386 = vld [vmem:[#allocation5 + $0x1d8] sm:$0xff]
        %v387 = vld [vmem:[#allocation5 + $0x1e0] sm:$0xff]
        %v388 = vld [vmem:[#allocation5 + $0x1e8] sm:$0xff]
        %v389 = vld [vmem:[#allocation5 + $0x1f0] sm:$0xff]
        %v390 = vld [vmem:[#allocation5 + $0x1f8] sm:$0xff]
        %v391 = vld [vmem:[#allocation7] sm:$0xf]
        %v393 = vperm.slane %v391, 0
        %v394 = vperm.slane %v391, 1
        %v395 = vperm.slane %v391, 2
        %v396 = vperm.slane %v391, 3
        %401 = vmatpush.msra.mxu0 %v387
        %402 = vmatpush.msra.mxu0 %v383
        %403 = vmatpush.msra.mxu0 %v379
        %404 = vmatpush.msra.mxu0 %v375
        %405 = vmatpush.msra.mxu0 %v371
        %406 = vmatpush.msra.mxu0 %v367
        %407 = vmatpush.msra.mxu0 %v363
        %408 = vmatpush.msra.mxu0 %v359
        %409 = vmatpush.msra.mxu0 %v355
        %410 = vmatpush.msra.mxu0 %v351
        %411 = vmatpush.msra.mxu0 %v347
        %412 = vmatpush.msra.mxu0 %v343
        %413 = vmatpush.msra.mxu0 %v339
        %414 = vmatpush.msra.mxu0 %v335
        %415 = vmatpush.msra.mxu0 %v331
        %416 = vmatpush.msra.mxu0 %v327
        %417 = vmatmul.f32.gmra.mxu0 %v295
        %v418 = vpop.f32.mrf.mxu0
        %v419 = vadd.f32 %v393, %v418
        %420 = vmatmul.f32.gmra.mxu0 %v296
        %v421 = vpop.f32.mrf.mxu0
        %v422 = vadd.f32 %v393, %v421
        %423 = vmatmul.f32.gmra.mxu0 %v297
        %v424 = vpop.f32.mrf.mxu0
        %v425 = vadd.f32 %v393, %v424
        %426 = vmatmul.f32.gmra.mxu0 %v298
        %v427 = vpop.f32.mrf.mxu0
        %v428 = vadd.f32 %v393, %v427
        %429 = vmatmul.f32.gmra.mxu0 %v299
        %v430 = vpop.f32.mrf.mxu0
        %v431 = vadd.f32 %v393, %v430
        %432 = vmatmul.f32.gmra.mxu0 %v300
        %v433 = vpop.f32.mrf.mxu0
        %v434 = vadd.f32 %v393, %v433
        %435 = vmatmul.f32.gmra.mxu0 %v301
        %v436 = vpop.f32.mrf.mxu0
        %v437 = vadd.f32 %v393, %v436
        %438 = vmatmul.f32.gmra.mxu0 %v302
        %v439 = vpop.f32.mrf.mxu0
        %v440 = vadd.f32 %v393, %v439
        %441 = vmatmul.f32.gmra.mxu0 %v303
        %v442 = vpop.f32.mrf.mxu0
        %v443 = vadd.f32 %v393, %v442
        %444 = vmatmul.f32.gmra.mxu0 %v304
        %v445 = vpop.f32.mrf.mxu0
        %v446 = vadd.f32 %v393, %v445
        %447 = vmatmul.f32.gmra.mxu0 %v305
        %v448 = vpop.f32.mrf.mxu0
        %v449 = vadd.f32 %v393, %v448
        %450 = vmatmul.f32.gmra.mxu0 %v306
        %v451 = vpop.f32.mrf.mxu0
        %v452 = vadd.f32 %v393, %v451
        %453 = vmatmul.f32.gmra.mxu0 %v307
        %v454 = vpop.f32.mrf.mxu0
        %v455 = vadd.f32 %v393, %v454
        %456 = vmatmul.f32.gmra.mxu0 %v308
        %v457 = vpop.f32.mrf.mxu0
        %v458 = vadd.f32 %v393, %v457
        %459 = vmatmul.f32.gmra.mxu0 %v309
        %v460 = vpop.f32.mrf.mxu0
        %v461 = vadd.f32 %v393, %v460
        %462 = vmatmul.f32.gmra.mxu0 %v310
        %v463 = vpop.f32.mrf.mxu0
        %v464 = vadd.f32 %v393, %v463
        %465 = vmatmul.f32.gmra.mxu0 %v311
        %v466 = vpop.f32.mrf.mxu0
        %v467 = vadd.f32 %v393, %v466
        %468 = vmatmul.f32.gmra.mxu0 %v312
        %v469 = vpop.f32.mrf.mxu0
        %v470 = vadd.f32 %v393, %v469
        %471 = vmatmul.f32.gmra.mxu0 %v313
        %v472 = vpop.f32.mrf.mxu0
        %v473 = vadd.f32 %v393, %v472
        %474 = vmatmul.f32.gmra.mxu0 %v314
        %v475 = vpop.f32.mrf.mxu0
        %v476 = vadd.f32 %v393, %v475
        %477 = vmatmul.f32.gmra.mxu0 %v315
        %v478 = vpop.f32.mrf.mxu0
        %v479 = vadd.f32 %v393, %v478
        %480 = vmatmul.f32.gmra.mxu0 %v316
        %v481 = vpop.f32.mrf.mxu0
        %v482 = vadd.f32 %v393, %v481
        %483 = vmatmul.f32.gmra.mxu0 %v317
        %v484 = vpop.f32.mrf.mxu0
        %v485 = vadd.f32 %v393, %v484
        %486 = vmatmul.f32.gmra.mxu0 %v318
        %v487 = vpop.f32.mrf.mxu0
        %v488 = vadd.f32 %v393, %v487
        %489 = vmatmul.f32.gmra.mxu0 %v319
        %v490 = vpop.f32.mrf.mxu0
        %v491 = vadd.f32 %v393, %v490
        %492 = vmatmul.f32.gmra.mxu0 %v320
        %v493 = vpop.f32.mrf.mxu0
        %v494 = vadd.f32 %v393, %v493
        %495 = vmatmul.f32.gmra.mxu0 %v321
        %v496 = vpop.f32.mrf.mxu0
        %v497 = vadd.f32 %v393, %v496
        %498 = vmatmul.f32.gmra.mxu0 %v322
        %v499 = vpop.f32.mrf.mxu0
        %v500 = vadd.f32 %v393, %v499
        %501 = vmatmul.f32.gmra.mxu0 %v323
        %v502 = vpop.f32.mrf.mxu0
        %v503 = vadd.f32 %v393, %v502
        %504 = vmatmul.f32.gmra.mxu0 %v324
        %v505 = vpop.f32.mrf.mxu0
        %v506 = vadd.f32 %v393, %v505
        %507 = vmatmul.f32.gmra.mxu0 %v325
        %v508 = vpop.f32.mrf.mxu0
        %v509 = vadd.f32 %v393, %v508
        %510 = vmatmul.f32.gmra.mxu0 %v326
        %v511 = vpop.f32.mrf.mxu0
        %v512 = vadd.f32 %v393, %v511
        %513 = vdwg.mxu0
        %514 = vmatpush.msra.mxu0 %v388
        %515 = vmatpush.msra.mxu0 %v384
        %516 = vmatpush.msra.mxu0 %v380
        %517 = vmatpush.msra.mxu0 %v376
        %518 = vmatpush.msra.mxu0 %v372
        %519 = vmatpush.msra.mxu0 %v368
        %520 = vmatpush.msra.mxu0 %v364
        %521 = vmatpush.msra.mxu0 %v360
        %522 = vmatpush.msra.mxu0 %v356
        %523 = vmatpush.msra.mxu0 %v352
        %524 = vmatpush.msra.mxu0 %v348
        %525 = vmatpush.msra.mxu0 %v344
        %526 = vmatpush.msra.mxu0 %v340
        %527 = vmatpush.msra.mxu0 %v336
        %528 = vmatpush.msra.mxu0 %v332
        %529 = vmatpush.msra.mxu0 %v328
        %530 = vmatmul.f32.gmra.mxu0 %v295
        %v531 = vpop.f32.mrf.mxu0
        %v532 = vadd.f32 %v394, %v531
        %533 = vmatmul.f32.gmra.mxu0 %v296
        %v534 = vpop.f32.mrf.mxu0
        %v535 = vadd.f32 %v394, %v534
        %536 = vmatmul.f32.gmra.mxu0 %v297
        %v537 = vpop.f32.mrf.mxu0
        %v538 = vadd.f32 %v394, %v537
        %539 = vmatmul.f32.gmra.mxu0 %v298
        %v540 = vpop.f32.mrf.mxu0
        %v541 = vadd.f32 %v394, %v540
        %542 = vmatmul.f32.gmra.mxu0 %v299
        %v543 = vpop.f32.mrf.mxu0
        %v544 = vadd.f32 %v394, %v543
        %545 = vmatmul.f32.gmra.mxu0 %v300
        %v546 = vpop.f32.mrf.mxu0
        %v547 = vadd.f32 %v394, %v546
        %548 = vmatmul.f32.gmra.mxu0 %v301
        %v549 = vpop.f32.mrf.mxu0
        %v550 = vadd.f32 %v394, %v549
        %551 = vmatmul.f32.gmra.mxu0 %v302
        %v552 = vpop.f32.mrf.mxu0
        %v553 = vadd.f32 %v394, %v552
        %554 = vmatmul.f32.gmra.mxu0 %v303
        %v555 = vpop.f32.mrf.mxu0
        %v556 = vadd.f32 %v394, %v555
        %557 = vmatmul.f32.gmra.mxu0 %v304
        %v558 = vpop.f32.mrf.mxu0
        %v559 = vadd.f32 %v394, %v558
        %560 = vmatmul.f32.gmra.mxu0 %v305
        %v561 = vpop.f32.mrf.mxu0
        %v562 = vadd.f32 %v394, %v561
        %563 = vmatmul.f32.gmra.mxu0 %v306
        %v564 = vpop.f32.mrf.mxu0
        %v565 = vadd.f32 %v394, %v564
        %566 = vmatmul.f32.gmra.mxu0 %v307
        %v567 = vpop.f32.mrf.mxu0
        %v568 = vadd.f32 %v394, %v567
        %569 = vmatmul.f32.gmra.mxu0 %v308
        %v570 = vpop.f32.mrf.mxu0
        %v571 = vadd.f32 %v394, %v570
        %572 = vmatmul.f32.gmra.mxu0 %v309
        %v573 = vpop.f32.mrf.mxu0
        %v574 = vadd.f32 %v394, %v573
        %575 = vmatmul.f32.gmra.mxu0 %v310
        %v576 = vpop.f32.mrf.mxu0
        %v577 = vadd.f32 %v394, %v576
        %578 = vmatmul.f32.gmra.mxu0 %v311
        %v579 = vpop.f32.mrf.mxu0
        %v580 = vadd.f32 %v394, %v579
        %581 = vmatmul.f32.gmra.mxu0 %v312
        %v582 = vpop.f32.mrf.mxu0
        %v583 = vadd.f32 %v394, %v582
        %584 = vmatmul.f32.gmra.mxu0 %v313
        %v585 = vpop.f32.mrf.mxu0
        %v586 = vadd.f32 %v394, %v585
        %587 = vmatmul.f32.gmra.mxu0 %v314
        %v588 = vpop.f32.mrf.mxu0
        %v589 = vadd.f32 %v394, %v588
        %590 = vmatmul.f32.gmra.mxu0 %v315
        %v591 = vpop.f32.mrf.mxu0
        %v592 = vadd.f32 %v394, %v591
        %593 = vmatmul.f32.gmra.mxu0 %v316
        %v594 = vpop.f32.mrf.mxu0
        %v595 = vadd.f32 %v394, %v594
        %596 = vmatmul.f32.gmra.mxu0 %v317
        %v597 = vpop.f32.mrf.mxu0
        %v598 = vadd.f32 %v394, %v597
        %599 = vmatmul.f32.gmra.mxu0 %v318
        %v600 = vpop.f32.mrf.mxu0
        %v601 = vadd.f32 %v394, %v600
        %602 = vmatmul.f32.gmra.mxu0 %v319
        %v603 = vpop.f32.mrf.mxu0
        %v604 = vadd.f32 %v394, %v603
        %605 = vmatmul.f32.gmra.mxu0 %v320
        %v606 = vpop.f32.mrf.mxu0
        %v607 = vadd.f32 %v394, %v606
        %608 = vmatmul.f32.gmra.mxu0 %v321
        %v609 = vpop.f32.mrf.mxu0
        %v610 = vadd.f32 %v394, %v609
        %611 = vmatmul.f32.gmra.mxu0 %v322
        %v612 = vpop.f32.mrf.mxu0
        %v613 = vadd.f32 %v394, %v612
        %614 = vmatmul.f32.gmra.mxu0 %v323
        %v615 = vpop.f32.mrf.mxu0
        %v616 = vadd.f32 %v394, %v615
        %617 = vmatmul.f32.gmra.mxu0 %v324
        %v618 = vpop.f32.mrf.mxu0
        %v619 = vadd.f32 %v394, %v618
        %620 = vmatmul.f32.gmra.mxu0 %v325
        %v621 = vpop.f32.mrf.mxu0
        %v622 = vadd.f32 %v394, %v621
        %623 = vmatmul.f32.gmra.mxu0 %v326
        %v624 = vpop.f32.mrf.mxu0
        %v625 = vadd.f32 %v394, %v624
        %626 = vdwg.mxu0
        %627 = vmatpush.msra.mxu0 %v389
        %628 = vmatpush.msra.mxu0 %v385
        %629 = vmatpush.msra.mxu0 %v381
        %630 = vmatpush.msra.mxu0 %v377
        %631 = vmatpush.msra.mxu0 %v373
        %632 = vmatpush.msra.mxu0 %v369
        %633 = vmatpush.msra.mxu0 %v365
        %634 = vmatpush.msra.mxu0 %v361
        %635 = vmatpush.msra.mxu0 %v357
        %636 = vmatpush.msra.mxu0 %v353
        %637 = vmatpush.msra.mxu0 %v349
        %638 = vmatpush.msra.mxu0 %v345
        %639 = vmatpush.msra.mxu0 %v341
        %640 = vmatpush.msra.mxu0 %v337
        %641 = vmatpush.msra.mxu0 %v333
        %642 = vmatpush.msra.mxu0 %v329
        %643 = vmatmul.f32.gmra.mxu0 %v295
        %v644 = vpop.f32.mrf.mxu0
        %v645 = vadd.f32 %v395, %v644
        %646 = vmatmul.f32.gmra.mxu0 %v296
        %v647 = vpop.f32.mrf.mxu0
        %v648 = vadd.f32 %v395, %v647
        %649 = vmatmul.f32.gmra.mxu0 %v297
        %v650 = vpop.f32.mrf.mxu0
        %v651 = vadd.f32 %v395, %v650
        %652 = vmatmul.f32.gmra.mxu0 %v298
        %v653 = vpop.f32.mrf.mxu0
        %v654 = vadd.f32 %v395, %v653
        %655 = vmatmul.f32.gmra.mxu0 %v299
        %v656 = vpop.f32.mrf.mxu0
        %v657 = vadd.f32 %v395, %v656
        %658 = vmatmul.f32.gmra.mxu0 %v300
        %v659 = vpop.f32.mrf.mxu0
        %v660 = vadd.f32 %v395, %v659
        %661 = vmatmul.f32.gmra.mxu0 %v301
        %v662 = vpop.f32.mrf.mxu0
        %v663 = vadd.f32 %v395, %v662
        %664 = vmatmul.f32.gmra.mxu0 %v302
        %v665 = vpop.f32.mrf.mxu0
        %v666 = vadd.f32 %v395, %v665
        %667 = vmatmul.f32.gmra.mxu0 %v303
        %v668 = vpop.f32.mrf.mxu0
        %v669 = vadd.f32 %v395, %v668
        %670 = vmatmul.f32.gmra.mxu0 %v304
        %v671 = vpop.f32.mrf.mxu0
        %v672 = vadd.f32 %v395, %v671
        %673 = vmatmul.f32.gmra.mxu0 %v305
        %v674 = vpop.f32.mrf.mxu0
        %v675 = vadd.f32 %v395, %v674
        %676 = vmatmul.f32.gmra.mxu0 %v306
        %v677 = vpop.f32.mrf.mxu0
        %v678 = vadd.f32 %v395, %v677
        %679 = vmatmul.f32.gmra.mxu0 %v307
        %v680 = vpop.f32.mrf.mxu0
        %v681 = vadd.f32 %v395, %v680
        %682 = vmatmul.f32.gmra.mxu0 %v308
        %v683 = vpop.f32.mrf.mxu0
        %v684 = vadd.f32 %v395, %v683
        %685 = vmatmul.f32.gmra.mxu0 %v309
        %v686 = vpop.f32.mrf.mxu0
        %v687 = vadd.f32 %v395, %v686
        %688 = vmatmul.f32.gmra.mxu0 %v310
        %v689 = vpop.f32.mrf.mxu0
        %v690 = vadd.f32 %v395, %v689
        %691 = vmatmul.f32.gmra.mxu0 %v311
        %v692 = vpop.f32.mrf.mxu0
        %v693 = vadd.f32 %v395, %v692
        %694 = vmatmul.f32.gmra.mxu0 %v312
        %v695 = vpop.f32.mrf.mxu0
        %v696 = vadd.f32 %v395, %v695
        %697 = vmatmul.f32.gmra.mxu0 %v313
        %v698 = vpop.f32.mrf.mxu0
        %v699 = vadd.f32 %v395, %v698
        %700 = vmatmul.f32.gmra.mxu0 %v314
        %v701 = vpop.f32.mrf.mxu0
        %v702 = vadd.f32 %v395, %v701
        %703 = vmatmul.f32.gmra.mxu0 %v315
        %v704 = vpop.f32.mrf.mxu0
        %v705 = vadd.f32 %v395, %v704
        %706 = vmatmul.f32.gmra.mxu0 %v316
        %v707 = vpop.f32.mrf.mxu0
        %v708 = vadd.f32 %v395, %v707
        %709 = vmatmul.f32.gmra.mxu0 %v317
        %v710 = vpop.f32.mrf.mxu0
        %v711 = vadd.f32 %v395, %v710
        %712 = vmatmul.f32.gmra.mxu0 %v318
        %v713 = vpop.f32.mrf.mxu0
        %v714 = vadd.f32 %v395, %v713
        %715 = vmatmul.f32.gmra.mxu0 %v319
        %v716 = vpop.f32.mrf.mxu0
        %v717 = vadd.f32 %v395, %v716
        %718 = vmatmul.f32.gmra.mxu0 %v320
        %v719 = vpop.f32.mrf.mxu0
        %v720 = vadd.f32 %v395, %v719
        %721 = vmatmul.f32.gmra.mxu0 %v321
        %v722 = vpop.f32.mrf.mxu0
        %v723 = vadd.f32 %v395, %v722
        %724 = vmatmul.f32.gmra.mxu0 %v322
        %v725 = vpop.f32.mrf.mxu0
        %v726 = vadd.f32 %v395, %v725
        %727 = vmatmul.f32.gmra.mxu0 %v323
        %v728 = vpop.f32.mrf.mxu0
        %v729 = vadd.f32 %v395, %v728
        %730 = vmatmul.f32.gmra.mxu0 %v324
        %v731 = vpop.f32.mrf.mxu0
        %v732 = vadd.f32 %v395, %v731
        %733 = vmatmul.f32.gmra.mxu0 %v325
        %v734 = vpop.f32.mrf.mxu0
        %v735 = vadd.f32 %v395, %v734
        %736 = vmatmul.f32.gmra.mxu0 %v326
        %v737 = vpop.f32.mrf.mxu0
        %v738 = vadd.f32 %v395, %v737
        %739 = vdwg.mxu0
        %740 = vmatpush.msra.mxu0 %v390
        %741 = vmatpush.msra.mxu0 %v386
        %742 = vmatpush.msra.mxu0 %v382
        %743 = vmatpush.msra.mxu0 %v378
        %744 = vmatpush.msra.mxu0 %v374
        %745 = vmatpush.msra.mxu0 %v370
        %746 = vmatpush.msra.mxu0 %v366
        %747 = vmatpush.msra.mxu0 %v362
        %748 = vmatpush.msra.mxu0 %v358
        %749 = vmatpush.msra.mxu0 %v354
        %750 = vmatpush.msra.mxu0 %v350
        %751 = vmatpush.msra.mxu0 %v346
        %752 = vmatpush.msra.mxu0 %v342
        %753 = vmatpush.msra.mxu0 %v338
        %754 = vmatpush.msra.mxu0 %v334
        %755 = vmatpush.msra.mxu0 %v330
        %756 = vmatmul.f32.gmra.mxu0 %v295
        %v757 = vpop.f32.mrf.mxu0
        %v758 = vadd.f32 %v396, %v757
        %759 = vmatmul.f32.gmra.mxu0 %v296
        %v760 = vpop.f32.mrf.mxu0
        %v761 = vadd.f32 %v396, %v760
        %762 = vmatmul.f32.gmra.mxu0 %v297
        %v763 = vpop.f32.mrf.mxu0
        %v764 = vadd.f32 %v396, %v763
        %765 = vmatmul.f32.gmra.mxu0 %v298
        %v766 = vpop.f32.mrf.mxu0
        %v767 = vadd.f32 %v396, %v766
        %768 = vmatmul.f32.gmra.mxu0 %v299
        %v769 = vpop.f32.mrf.mxu0
        %v770 = vadd.f32 %v396, %v769
        %771 = vmatmul.f32.gmra.mxu0 %v300
        %v772 = vpop.f32.mrf.mxu0
        %v773 = vadd.f32 %v396, %v772
        %774 = vmatmul.f32.gmra.mxu0 %v301
        %v775 = vpop.f32.mrf.mxu0
        %v776 = vadd.f32 %v396, %v775
        %777 = vmatmul.f32.gmra.mxu0 %v302
        %v778 = vpop.f32.mrf.mxu0
        %v779 = vadd.f32 %v396, %v778
        %780 = vmatmul.f32.gmra.mxu0 %v303
        %v781 = vpop.f32.mrf.mxu0
        %v782 = vadd.f32 %v396, %v781
        %783 = vmatmul.f32.gmra.mxu0 %v304
        %v784 = vpop.f32.mrf.mxu0
        %v785 = vadd.f32 %v396, %v784
        %786 = vmatmul.f32.gmra.mxu0 %v305
        %v787 = vpop.f32.mrf.mxu0
        %v788 = vadd.f32 %v396, %v787
        %789 = vmatmul.f32.gmra.mxu0 %v306
        %v790 = vpop.f32.mrf.mxu0
        %v791 = vadd.f32 %v396, %v790
        %792 = vmatmul.f32.gmra.mxu0 %v307
        %v793 = vpop.f32.mrf.mxu0
        %v794 = vadd.f32 %v396, %v793
        %795 = vmatmul.f32.gmra.mxu0 %v308
        %v796 = vpop.f32.mrf.mxu0
        %v797 = vadd.f32 %v396, %v796
        %798 = vmatmul.f32.gmra.mxu0 %v309
        %v799 = vpop.f32.mrf.mxu0
        %v800 = vadd.f32 %v396, %v799
        %801 = vmatmul.f32.gmra.mxu0 %v310
        %v802 = vpop.f32.mrf.mxu0
        %v803 = vadd.f32 %v396, %v802
        %804 = vmatmul.f32.gmra.mxu0 %v311
        %v805 = vpop.f32.mrf.mxu0
        %v806 = vadd.f32 %v396, %v805
        %807 = vmatmul.f32.gmra.mxu0 %v312
        %v808 = vpop.f32.mrf.mxu0
        %v809 = vadd.f32 %v396, %v808
        %810 = vmatmul.f32.gmra.mxu0 %v313
        %v811 = vpop.f32.mrf.mxu0
        %v812 = vadd.f32 %v396, %v811
        %813 = vmatmul.f32.gmra.mxu0 %v314
        %v814 = vpop.f32.mrf.mxu0
        %v815 = vadd.f32 %v396, %v814
        %816 = vmatmul.f32.gmra.mxu0 %v315
        %v817 = vpop.f32.mrf.mxu0
        %v818 = vadd.f32 %v396, %v817
        %819 = vmatmul.f32.gmra.mxu0 %v316
        %v820 = vpop.f32.mrf.mxu0
        %v821 = vadd.f32 %v396, %v820
        %822 = vmatmul.f32.gmra.mxu0 %v317
        %v823 = vpop.f32.mrf.mxu0
        %v824 = vadd.f32 %v396, %v823
        %825 = vmatmul.f32.gmra.mxu0 %v318
        %v826 = vpop.f32.mrf.mxu0
        %v827 = vadd.f32 %v396, %v826
        %828 = vmatmul.f32.gmra.mxu0 %v319
        %v829 = vpop.f32.mrf.mxu0
        %v830 = vadd.f32 %v396, %v829
        %831 = vmatmul.f32.gmra.mxu0 %v320
        %v832 = vpop.f32.mrf.mxu0
        %v833 = vadd.f32 %v396, %v832
        %834 = vmatmul.f32.gmra.mxu0 %v321
        %v835 = vpop.f32.mrf.mxu0
        %v836 = vadd.f32 %v396, %v835
        %837 = vmatmul.f32.gmra.mxu0 %v322
        %v838 = vpop.f32.mrf.mxu0
        %v839 = vadd.f32 %v396, %v838
        %840 = vmatmul.f32.gmra.mxu0 %v323
        %v841 = vpop.f32.mrf.mxu0
        %v842 = vadd.f32 %v396, %v841
        %843 = vmatmul.f32.gmra.mxu0 %v324
        %v844 = vpop.f32.mrf.mxu0
        %v845 = vadd.f32 %v396, %v844
        %846 = vmatmul.f32.gmra.mxu0 %v325
        %v847 = vpop.f32.mrf.mxu0
        %v848 = vadd.f32 %v396, %v847
        %849 = vmatmul.f32.gmra.mxu0 %v326
        %v850 = vpop.f32.mrf.mxu0
        %v851 = vadd.f32 %v396, %v850
        %852 = vdwg.mxu0
        %v853 = vmax.f32 %v419, 0.0
        %v854 = vmax.f32 %v532, 0.0
        %v855 = vmax.f32 %v645, 0.0
        %v856 = vmax.f32 %v758, 0.0
        %v857 = vmax.f32 %v422, 0.0
        %v858 = vmax.f32 %v535, 0.0
        %v859 = vmax.f32 %v648, 0.0
        %v860 = vmax.f32 %v761, 0.0
        %v861 = vmax.f32 %v425, 0.0
        %v862 = vmax.f32 %v538, 0.0
        %v863 = vmax.f32 %v651, 0.0
        %v864 = vmax.f32 %v764, 0.0
        %v865 = vmax.f32 %v428, 0.0
        %v866 = vmax.f32 %v541, 0.0
        %v867 = vmax.f32 %v654, 0.0
        %v868 = vmax.f32 %v767, 0.0
        %v869 = vmax.f32 %v431, 0.0
        %v870 = vmax.f32 %v544, 0.0
        %v871 = vmax.f32 %v657, 0.0
        %v872 = vmax.f32 %v770, 0.0
        %v873 = vmax.f32 %v434, 0.0
        %v874 = vmax.f32 %v547, 0.0
        %v875 = vmax.f32 %v660, 0.0
        %v876 = vmax.f32 %v773, 0.0
        %v877 = vmax.f32 %v437, 0.0
        %v878 = vmax.f32 %v550, 0.0
        %v879 = vmax.f32 %v663, 0.0
        %v880 = vmax.f32 %v776, 0.0
        %v881 = vmax.f32 %v440, 0.0
        %v882 = vmax.f32 %v553, 0.0
        %v883 = vmax.f32 %v666, 0.0
        %v884 = vmax.f32 %v779, 0.0
        %v885 = vmax.f32 %v443, 0.0
        %v886 = vmax.f32 %v556, 0.0
        %v887 = vmax.f32 %v669, 0.0
        %v888 = vmax.f32 %v782, 0.0
        %v889 = vmax.f32 %v446, 0.0
        %v890 = vmax.f32 %v559, 0.0
        %v891 = vmax.f32 %v672, 0.0
        %v892 = vmax.f32 %v785, 0.0
        %v893 = vmax.f32 %v449, 0.0
        %v894 = vmax.f32 %v562, 0.0
        %v895 = vmax.f32 %v675, 0.0
        %v896 = vmax.f32 %v788, 0.0
        %v897 = vmax.f32 %v452, 0.0
        %v898 = vmax.f32 %v565, 0.0
        %v899 = vmax.f32 %v678, 0.0
        %v900 = vmax.f32 %v791, 0.0
        %v901 = vmax.f32 %v455, 0.0
        %v902 = vmax.f32 %v568, 0.0
        %v903 = vmax.f32 %v681, 0.0
        %v904 = vmax.f32 %v794, 0.0
        %v905 = vmax.f32 %v458, 0.0
        %v906 = vmax.f32 %v571, 0.0
        %v907 = vmax.f32 %v684, 0.0
        %v908 = vmax.f32 %v797, 0.0
        %v909 = vmax.f32 %v461, 0.0
        %v910 = vmax.f32 %v574, 0.0
        %v911 = vmax.f32 %v687, 0.0
        %v912 = vmax.f32 %v800, 0.0
        %v913 = vmax.f32 %v464, 0.0
        %v914 = vmax.f32 %v577, 0.0
        %v915 = vmax.f32 %v690, 0.0
        %v916 = vmax.f32 %v803, 0.0
        %v917 = vmax.f32 %v467, 0.0
        %v918 = vmax.f32 %v580, 0.0
        %v919 = vmax.f32 %v693, 0.0
        %v920 = vmax.f32 %v806, 0.0
        %v921 = vmax.f32 %v470, 0.0
        %v922 = vmax.f32 %v583, 0.0
        %v923 = vmax.f32 %v696, 0.0
        %v924 = vmax.f32 %v809, 0.0
        %v925 = vmax.f32 %v473, 0.0
        %v926 = vmax.f32 %v586, 0.0
        %v927 = vmax.f32 %v699, 0.0
        %v928 = vmax.f32 %v812, 0.0
        %v929 = vmax.f32 %v476, 0.0
        %v930 = vmax.f32 %v589, 0.0
        %v931 = vmax.f32 %v702, 0.0
        %v932 = vmax.f32 %v815, 0.0
        %v933 = vmax.f32 %v479, 0.0
        %v934 = vmax.f32 %v592, 0.0
        %v935 = vmax.f32 %v705, 0.0
        %v936 = vmax.f32 %v818, 0.0
        %v937 = vmax.f32 %v482, 0.0
        %v938 = vmax.f32 %v595, 0.0
        %v939 = vmax.f32 %v708, 0.0
        %v940 = vmax.f32 %v821, 0.0
        %v941 = vmax.f32 %v485, 0.0
        %v942 = vmax.f32 %v598, 0.0
        %v943 = vmax.f32 %v711, 0.0
        %v944 = vmax.f32 %v824, 0.0
        %v945 = vmax.f32 %v488, 0.0
        %v946 = vmax.f32 %v601, 0.0
        %v947 = vmax.f32 %v714, 0.0
        %v948 = vmax.f32 %v827, 0.0
        %v949 = vmax.f32 %v491, 0.0
        %v950 = vmax.f32 %v604, 0.0
        %v951 = vmax.f32 %v717, 0.0
        %v952 = vmax.f32 %v830, 0.0
        %v953 = vmax.f32 %v494, 0.0
        %v954 = vmax.f32 %v607, 0.0
        %v955 = vmax.f32 %v720, 0.0
        %v956 = vmax.f32 %v833, 0.0
        %v957 = vmax.f32 %v497, 0.0
        %v958 = vmax.f32 %v610, 0.0
        %v959 = vmax.f32 %v723, 0.0
        %v960 = vmax.f32 %v836, 0.0
        %v961 = vmax.f32 %v500, 0.0
        %v962 = vmax.f32 %v613, 0.0
        %v963 = vmax.f32 %v726, 0.0
        %v964 = vmax.f32 %v839, 0.0
        %v965 = vmax.f32 %v503, 0.0
        %v966 = vmax.f32 %v616, 0.0
        %v967 = vmax.f32 %v729, 0.0
        %v968 = vmax.f32 %v842, 0.0
        %v969 = vmax.f32 %v506, 0.0
        %v970 = vmax.f32 %v619, 0.0
        %v971 = vmax.f32 %v732, 0.0
        %v972 = vmax.f32 %v845, 0.0
        %v973 = vmax.f32 %v509, 0.0
        %v974 = vmax.f32 %v622, 0.0
        %v975 = vmax.f32 %v735, 0.0
        %v976 = vmax.f32 %v848, 0.0
        %v977 = vmax.f32 %v512, 0.0
        %v978 = vmax.f32 %v625, 0.0
        %v979 = vmax.f32 %v738, 0.0
        %v980 = vmax.f32 %v851, 0.0
        %v981 = vld [vmem:[#allocation8] sm:$0xff]
        %v982 = vld [vmem:[#allocation8 + $0x8] sm:$0xff]
        %v983 = vld [vmem:[#allocation8 + $0x10] sm:$0xff]
        %v984 = vld [vmem:[#allocation8 + $0x18] sm:$0xff]
        %v985 = vld [vmem:[#allocation8 + $0x20] sm:$0xff]
        %v986 = vld [vmem:[#allocation8 + $0x28] sm:$0xff]
        %v987 = vld [vmem:[#allocation8 + $0x30] sm:$0xff]
        %v988 = vld [vmem:[#allocation8 + $0x38] sm:$0xff]
        %v989 = vld [vmem:[#allocation8 + $0x40] sm:$0xff]
        %v990 = vld [vmem:[#allocation8 + $0x48] sm:$0xff]
        %v991 = vld [vmem:[#allocation8 + $0x50] sm:$0xff]
        %v992 = vld [vmem:[#allocation8 + $0x58] sm:$0xff]
        %v993 = vld [vmem:[#allocation8 + $0x60] sm:$0xff]
        %v994 = vld [vmem:[#allocation8 + $0x68] sm:$0xff]
        %v995 = vld [vmem:[#allocation8 + $0x70] sm:$0xff]
        %v996 = vld [vmem:[#allocation8 + $0x78] sm:$0xff]
        %v997 = vld [vmem:[#allocation8 + $0x80] sm:$0xff]
        %v998 = vld [vmem:[#allocation8 + $0x88] sm:$0xff]
        %v999 = vld [vmem:[#allocation8 + $0x90] sm:$0xff]
        %v1000 = vld [vmem:[#allocation8 + $0x98] sm:$0xff]
        %v1001 = vld [vmem:[#allocation8 + $0xa0] sm:$0xff]
        %v1002 = vld [vmem:[#allocation8 + $0xa8] sm:$0xff]
        %v1003 = vld [vmem:[#allocation8 + $0xb0] sm:$0xff]
        %v1004 = vld [vmem:[#allocation8 + $0xb8] sm:$0xff]
        %v1005 = vld [vmem:[#allocation8 + $0xc0] sm:$0xff]
        %v1006 = vld [vmem:[#allocation8 + $0xc8] sm:$0xff]
        %v1007 = vld [vmem:[#allocation8 + $0xd0] sm:$0xff]
        %v1008 = vld [vmem:[#allocation8 + $0xd8] sm:$0xff]
        %v1009 = vld [vmem:[#allocation8 + $0xe0] sm:$0xff]
        %v1010 = vld [vmem:[#allocation8 + $0xe8] sm:$0xff]
        %v1011 = vld [vmem:[#allocation8 + $0xf0] sm:$0xff]
        %v1012 = vld [vmem:[#allocation8 + $0xf8] sm:$0xff]
        %v1013 = vld [vmem:[#allocation8 + $0x100] sm:$0xff]
        %v1014 = vld [vmem:[#allocation8 + $0x108] sm:$0xff]
        %v1015 = vld [vmem:[#allocation8 + $0x110] sm:$0xff]
        %v1016 = vld [vmem:[#allocation8 + $0x118] sm:$0xff]
        %v1017 = vld [vmem:[#allocation8 + $0x120] sm:$0xff]
        %v1018 = vld [vmem:[#allocation8 + $0x128] sm:$0xff]
        %v1019 = vld [vmem:[#allocation8 + $0x130] sm:$0xff]
        %v1020 = vld [vmem:[#allocation8 + $0x138] sm:$0xff]
        %v1021 = vld [vmem:[#allocation8 + $0x140] sm:$0xff]
        %v1022 = vld [vmem:[#allocation8 + $0x148] sm:$0xff]
        %v1023 = vld [vmem:[#allocation8 + $0x150] sm:$0xff]
        %v1024 = vld [vmem:[#allocation8 + $0x158] sm:$0xff]
        %v1025 = vld [vmem:[#allocation8 + $0x160] sm:$0xff]
        %v1026 = vld [vmem:[#allocation8 + $0x168] sm:$0xff]
        %v1027 = vld [vmem:[#allocation8 + $0x170] sm:$0xff]
        %v1028 = vld [vmem:[#allocation8 + $0x178] sm:$0xff]
        %v1029 = vld [vmem:[#allocation8 + $0x180] sm:$0xff]
        %v1030 = vld [vmem:[#allocation8 + $0x188] sm:$0xff]
        %v1031 = vld [vmem:[#allocation8 + $0x190] sm:$0xff]
        %v1032 = vld [vmem:[#allocation8 + $0x198] sm:$0xff]
        %v1033 = vld [vmem:[#allocation8 + $0x1a0] sm:$0xff]
        %v1034 = vld [vmem:[#allocation8 + $0x1a8] sm:$0xff]
        %v1035 = vld [vmem:[#allocation8 + $0x1b0] sm:$0xff]
        %v1036 = vld [vmem:[#allocation8 + $0x1b8] sm:$0xff]
        %v1037 = vld [vmem:[#allocation8 + $0x1c0] sm:$0xff]
        %v1038 = vld [vmem:[#allocation8 + $0x1c8] sm:$0xff]
        %v1039 = vld [vmem:[#allocation8 + $0x1d0] sm:$0xff]
        %v1040 = vld [vmem:[#allocation8 + $0x1d8] sm:$0xff]
        %v1041 = vld [vmem:[#allocation8 + $0x1e0] sm:$0xff]
        %v1042 = vld [vmem:[#allocation8 + $0x1e8] sm:$0xff]
        %v1043 = vld [vmem:[#allocation8 + $0x1f0] sm:$0xff]
        %v1044 = vld [vmem:[#allocation8 + $0x1f8] sm:$0xff]
        %v1045 = vld [vmem:[%s4] sm:$0x1]
        %v1047 = vperm.slane %v1045, 0
        %1049 = vmatpush.msra.mxu0 %v996
        %1050 = vmatpush.msra.mxu0 %v995
        %1051 = vmatpush.msra.mxu0 %v994
        %1052 = vmatpush.msra.mxu0 %v993
        %1053 = vmatpush.msra.mxu0 %v992
        %1054 = vmatpush.msra.mxu0 %v991
        %1055 = vmatpush.msra.mxu0 %v990
        %1056 = vmatpush.msra.mxu0 %v989
        %1057 = vmatpush.msra.mxu0 %v988
        %1058 = vmatpush.msra.mxu0 %v987
        %1059 = vmatpush.msra.mxu0 %v986
        %1060 = vmatpush.msra.mxu0 %v985
        %1061 = vmatpush.msra.mxu0 %v984
        %1062 = vmatpush.msra.mxu0 %v983
        %1063 = vmatpush.msra.mxu0 %v982
        %1064 = vmatpush.msra.mxu0 %v981
        %1065 = vmatmul.f32.gmra.mxu0 %v853
        %v1066 = vpop.f32.mrf.mxu0
        %v1067 = vadd.f32 %v1047, %v1066
        %1068 = vmatmul.f32.gmra.mxu0 %v857
        %v1069 = vpop.f32.mrf.mxu0
        %v1070 = vadd.f32 %v1047, %v1069
        %1071 = vmatmul.f32.gmra.mxu0 %v861
        %v1072 = vpop.f32.mrf.mxu0
        %v1073 = vadd.f32 %v1047, %v1072
        %1074 = vmatmul.f32.gmra.mxu0 %v865
        %v1075 = vpop.f32.mrf.mxu0
        %v1076 = vadd.f32 %v1047, %v1075
        %1077 = vmatmul.f32.gmra.mxu0 %v869
        %v1078 = vpop.f32.mrf.mxu0
        %v1079 = vadd.f32 %v1047, %v1078
        %1080 = vmatmul.f32.gmra.mxu0 %v873
        %v1081 = vpop.f32.mrf.mxu0
        %v1082 = vadd.f32 %v1047, %v1081
        %1083 = vmatmul.f32.gmra.mxu0 %v877
        %v1084 = vpop.f32.mrf.mxu0
        %v1085 = vadd.f32 %v1047, %v1084
        %1086 = vmatmul.f32.gmra.mxu0 %v881
        %v1087 = vpop.f32.mrf.mxu0
        %v1088 = vadd.f32 %v1047, %v1087
        %1089 = vmatmul.f32.gmra.mxu0 %v885
        %v1090 = vpop.f32.mrf.mxu0
        %v1091 = vadd.f32 %v1047, %v1090
        %1092 = vmatmul.f32.gmra.mxu0 %v889
        %v1093 = vpop.f32.mrf.mxu0
        %v1094 = vadd.f32 %v1047, %v1093
        %1095 = vmatmul.f32.gmra.mxu0 %v893
        %v1096 = vpop.f32.mrf.mxu0
        %v1097 = vadd.f32 %v1047, %v1096
        %1098 = vmatmul.f32.gmra.mxu0 %v897
        %v1099 = vpop.f32.mrf.mxu0
        %v1100 = vadd.f32 %v1047, %v1099
        %1101 = vmatmul.f32.gmra.mxu0 %v901
        %v1102 = vpop.f32.mrf.mxu0
        %v1103 = vadd.f32 %v1047, %v1102
        %1104 = vmatmul.f32.gmra.mxu0 %v905
        %v1105 = vpop.f32.mrf.mxu0
        %v1106 = vadd.f32 %v1047, %v1105
        %1107 = vmatmul.f32.gmra.mxu0 %v909
        %v1108 = vpop.f32.mrf.mxu0
        %v1109 = vadd.f32 %v1047, %v1108
        %1110 = vmatmul.f32.gmra.mxu0 %v913
        %v1111 = vpop.f32.mrf.mxu0
        %v1112 = vadd.f32 %v1047, %v1111
        %1113 = vmatmul.f32.gmra.mxu0 %v917
        %v1114 = vpop.f32.mrf.mxu0
        %v1115 = vadd.f32 %v1047, %v1114
        %1116 = vmatmul.f32.gmra.mxu0 %v921
        %v1117 = vpop.f32.mrf.mxu0
        %v1118 = vadd.f32 %v1047, %v1117
        %1119 = vmatmul.f32.gmra.mxu0 %v925
        %v1120 = vpop.f32.mrf.mxu0
        %v1121 = vadd.f32 %v1047, %v1120
        %1122 = vmatmul.f32.gmra.mxu0 %v929
        %v1123 = vpop.f32.mrf.mxu0
        %v1124 = vadd.f32 %v1047, %v1123
        %1125 = vmatmul.f32.gmra.mxu0 %v933
        %v1126 = vpop.f32.mrf.mxu0
        %v1127 = vadd.f32 %v1047, %v1126
        %1128 = vmatmul.f32.gmra.mxu0 %v937
        %v1129 = vpop.f32.mrf.mxu0
        %v1130 = vadd.f32 %v1047, %v1129
        %1131 = vmatmul.f32.gmra.mxu0 %v941
        %v1132 = vpop.f32.mrf.mxu0
        %v1133 = vadd.f32 %v1047, %v1132
        %1134 = vmatmul.f32.gmra.mxu0 %v945
        %v1135 = vpop.f32.mrf.mxu0
        %v1136 = vadd.f32 %v1047, %v1135
        %1137 = vmatmul.f32.gmra.mxu0 %v949
        %v1138 = vpop.f32.mrf.mxu0
        %v1139 = vadd.f32 %v1047, %v1138
        %1140 = vmatmul.f32.gmra.mxu0 %v953
        %v1141 = vpop.f32.mrf.mxu0
        %v1142 = vadd.f32 %v1047, %v1141
        %1143 = vmatmul.f32.gmra.mxu0 %v957
        %v1144 = vpop.f32.mrf.mxu0
        %v1145 = vadd.f32 %v1047, %v1144
        %1146 = vmatmul.f32.gmra.mxu0 %v961
        %v1147 = vpop.f32.mrf.mxu0
        %v1148 = vadd.f32 %v1047, %v1147
        %1149 = vmatmul.f32.gmra.mxu0 %v965
        %v1150 = vpop.f32.mrf.mxu0
        %v1151 = vadd.f32 %v1047, %v1150
        %1152 = vmatmul.f32.gmra.mxu0 %v969
        %v1153 = vpop.f32.mrf.mxu0
        %v1154 = vadd.f32 %v1047, %v1153
        %1155 = vmatmul.f32.gmra.mxu0 %v973
        %v1156 = vpop.f32.mrf.mxu0
        %v1157 = vadd.f32 %v1047, %v1156
        %1158 = vmatmul.f32.gmra.mxu0 %v977
        %v1159 = vpop.f32.mrf.mxu0
        %v1160 = vadd.f32 %v1047, %v1159
        %1161 = vdwg.mxu0
        %1162 = vmatpush.msra.mxu0 %v1012
        %1163 = vmatpush.msra.mxu0 %v1011
        %1164 = vmatpush.msra.mxu0 %v1010
        %1165 = vmatpush.msra.mxu0 %v1009
        %1166 = vmatpush.msra.mxu0 %v1008
        %1167 = vmatpush.msra.mxu0 %v1007
        %1168 = vmatpush.msra.mxu0 %v1006
        %1169 = vmatpush.msra.mxu0 %v1005
        %1170 = vmatpush.msra.mxu0 %v1004
        %1171 = vmatpush.msra.mxu0 %v1003
        %1172 = vmatpush.msra.mxu0 %v1002
        %1173 = vmatpush.msra.mxu0 %v1001
        %1174 = vmatpush.msra.mxu0 %v1000
        %1175 = vmatpush.msra.mxu0 %v999
        %1176 = vmatpush.msra.mxu0 %v998
        %1177 = vmatpush.msra.mxu0 %v997
        %1178 = vmatmul.f32.gmra.mxu0 %v854
        %v1179 = vpop.f32.mrf.mxu0
        %v1180 = vadd.f32 %v1067, %v1179
        %1181 = vmatmul.f32.gmra.mxu0 %v858
        %v1182 = vpop.f32.mrf.mxu0
        %v1183 = vadd.f32 %v1070, %v1182
        %1184 = vmatmul.f32.gmra.mxu0 %v862
        %v1185 = vpop.f32.mrf.mxu0
        %v1186 = vadd.f32 %v1073, %v1185
        %1187 = vmatmul.f32.gmra.mxu0 %v866
        %v1188 = vpop.f32.mrf.mxu0
        %v1189 = vadd.f32 %v1076, %v1188
        %1190 = vmatmul.f32.gmra.mxu0 %v870
        %v1191 = vpop.f32.mrf.mxu0
        %v1192 = vadd.f32 %v1079, %v1191
        %1193 = vmatmul.f32.gmra.mxu0 %v874
        %v1194 = vpop.f32.mrf.mxu0
        %v1195 = vadd.f32 %v1082, %v1194
        %1196 = vmatmul.f32.gmra.mxu0 %v878
        %v1197 = vpop.f32.mrf.mxu0
        %v1198 = vadd.f32 %v1085, %v1197
        %1199 = vmatmul.f32.gmra.mxu0 %v882
        %v1200 = vpop.f32.mrf.mxu0
        %v1201 = vadd.f32 %v1088, %v1200
        %1202 = vmatmul.f32.gmra.mxu0 %v886
        %v1203 = vpop.f32.mrf.mxu0
        %v1204 = vadd.f32 %v1091, %v1203
        %1205 = vmatmul.f32.gmra.mxu0 %v890
        %v1206 = vpop.f32.mrf.mxu0
        %v1207 = vadd.f32 %v1094, %v1206
        %1208 = vmatmul.f32.gmra.mxu0 %v894
        %v1209 = vpop.f32.mrf.mxu0
        %v1210 = vadd.f32 %v1097, %v1209
        %1211 = vmatmul.f32.gmra.mxu0 %v898
        %v1212 = vpop.f32.mrf.mxu0
        %v1213 = vadd.f32 %v1100, %v1212
        %1214 = vmatmul.f32.gmra.mxu0 %v902
        %v1215 = vpop.f32.mrf.mxu0
        %v1216 = vadd.f32 %v1103, %v1215
        %1217 = vmatmul.f32.gmra.mxu0 %v906
        %v1218 = vpop.f32.mrf.mxu0
        %v1219 = vadd.f32 %v1106, %v1218
        %1220 = vmatmul.f32.gmra.mxu0 %v910
        %v1221 = vpop.f32.mrf.mxu0
        %v1222 = vadd.f32 %v1109, %v1221
        %1223 = vmatmul.f32.gmra.mxu0 %v914
        %v1224 = vpop.f32.mrf.mxu0
        %v1225 = vadd.f32 %v1112, %v1224
        %1226 = vmatmul.f32.gmra.mxu0 %v918
        %v1227 = vpop.f32.mrf.mxu0
        %v1228 = vadd.f32 %v1115, %v1227
        %1229 = vmatmul.f32.gmra.mxu0 %v922
        %v1230 = vpop.f32.mrf.mxu0
        %v1231 = vadd.f32 %v1118, %v1230
        %1232 = vmatmul.f32.gmra.mxu0 %v926
        %v1233 = vpop.f32.mrf.mxu0
        %v1234 = vadd.f32 %v1121, %v1233
        %1235 = vmatmul.f32.gmra.mxu0 %v930
        %v1236 = vpop.f32.mrf.mxu0
        %v1237 = vadd.f32 %v1124, %v1236
        %1238 = vmatmul.f32.gmra.mxu0 %v934
        %v1239 = vpop.f32.mrf.mxu0
        %v1240 = vadd.f32 %v1127, %v1239
        %1241 = vmatmul.f32.gmra.mxu0 %v938
        %v1242 = vpop.f32.mrf.mxu0
        %v1243 = vadd.f32 %v1130, %v1242
        %1244 = vmatmul.f32.gmra.mxu0 %v942
        %v1245 = vpop.f32.mrf.mxu0
        %v1246 = vadd.f32 %v1133, %v1245
        %1247 = vmatmul.f32.gmra.mxu0 %v946
        %v1248 = vpop.f32.mrf.mxu0
        %v1249 = vadd.f32 %v1136, %v1248
        %1250 = vmatmul.f32.gmra.mxu0 %v950
        %v1251 = vpop.f32.mrf.mxu0
        %v1252 = vadd.f32 %v1139, %v1251
        %1253 = vmatmul.f32.gmra.mxu0 %v954
        %v1254 = vpop.f32.mrf.mxu0
        %v1255 = vadd.f32 %v1142, %v1254
        %1256 = vmatmul.f32.gmra.mxu0 %v958
        %v1257 = vpop.f32.mrf.mxu0
        %v1258 = vadd.f32 %v1145, %v1257
        %1259 = vmatmul.f32.gmra.mxu0 %v962
        %v1260 = vpop.f32.mrf.mxu0
        %v1261 = vadd.f32 %v1148, %v1260
        %1262 = vmatmul.f32.gmra.mxu0 %v966
        %v1263 = vpop.f32.mrf.mxu0
        %v1264 = vadd.f32 %v1151, %v1263
        %1265 = vmatmul.f32.gmra.mxu0 %v970
        %v1266 = vpop.f32.mrf.mxu0
        %v1267 = vadd.f32 %v1154, %v1266
        %1268 = vmatmul.f32.gmra.mxu0 %v974
        %v1269 = vpop.f32.mrf.mxu0
        %v1270 = vadd.f32 %v1157, %v1269
        %1271 = vmatmul.f32.gmra.mxu0 %v978
        %v1272 = vpop.f32.mrf.mxu0
        %v1273 = vadd.f32 %v1160, %v1272
        %1274 = vdwg.mxu0
        %1275 = vmatpush.msra.mxu0 %v1028
        %1276 = vmatpush.msra.mxu0 %v1027
        %1277 = vmatpush.msra.mxu0 %v1026
        %1278 = vmatpush.msra.mxu0 %v1025
        %1279 = vmatpush.msra.mxu0 %v1024
        %1280 = vmatpush.msra.mxu0 %v1023
        %1281 = vmatpush.msra.mxu0 %v1022
        %1282 = vmatpush.msra.mxu0 %v1021
        %1283 = vmatpush.msra.mxu0 %v1020
        %1284 = vmatpush.msra.mxu0 %v1019
        %1285 = vmatpush.msra.mxu0 %v1018
        %1286 = vmatpush.msra.mxu0 %v1017
        %1287 = vmatpush.msra.mxu0 %v1016
        %1288 = vmatpush.msra.mxu0 %v1015
        %1289 = vmatpush.msra.mxu0 %v1014
        %1290 = vmatpush.msra.mxu0 %v1013
        %1291 = vmatmul.f32.gmra.mxu0 %v855
        %v1292 = vpop.f32.mrf.mxu0
        %v1293 = vadd.f32 %v1180, %v1292
        %1294 = vmatmul.f32.gmra.mxu0 %v859
        %v1295 = vpop.f32.mrf.mxu0
        %v1296 = vadd.f32 %v1183, %v1295
        %1297 = vmatmul.f32.gmra.mxu0 %v863
        %v1298 = vpop.f32.mrf.mxu0
        %v1299 = vadd.f32 %v1186, %v1298
        %1300 = vmatmul.f32.gmra.mxu0 %v867
        %v1301 = vpop.f32.mrf.mxu0
        %v1302 = vadd.f32 %v1189, %v1301
        %1303 = vmatmul.f32.gmra.mxu0 %v871
        %v1304 = vpop.f32.mrf.mxu0
        %v1305 = vadd.f32 %v1192, %v1304
        %1306 = vmatmul.f32.gmra.mxu0 %v875
        %v1307 = vpop.f32.mrf.mxu0
        %v1308 = vadd.f32 %v1195, %v1307
        %1309 = vmatmul.f32.gmra.mxu0 %v879
        %v1310 = vpop.f32.mrf.mxu0
        %v1311 = vadd.f32 %v1198, %v1310
        %1312 = vmatmul.f32.gmra.mxu0 %v883
        %v1313 = vpop.f32.mrf.mxu0
        %v1314 = vadd.f32 %v1201, %v1313
        %1315 = vmatmul.f32.gmra.mxu0 %v887
        %v1316 = vpop.f32.mrf.mxu0
        %v1317 = vadd.f32 %v1204, %v1316
        %1318 = vmatmul.f32.gmra.mxu0 %v891
        %v1319 = vpop.f32.mrf.mxu0
        %v1320 = vadd.f32 %v1207, %v1319
        %1321 = vmatmul.f32.gmra.mxu0 %v895
        %v1322 = vpop.f32.mrf.mxu0
        %v1323 = vadd.f32 %v1210, %v1322
        %1324 = vmatmul.f32.gmra.mxu0 %v899
        %v1325 = vpop.f32.mrf.mxu0
        %v1326 = vadd.f32 %v1213, %v1325
        %1327 = vmatmul.f32.gmra.mxu0 %v903
        %v1328 = vpop.f32.mrf.mxu0
        %v1329 = vadd.f32 %v1216, %v1328
        %1330 = vmatmul.f32.gmra.mxu0 %v907
        %v1331 = vpop.f32.mrf.mxu0
        %v1332 = vadd.f32 %v1219, %v1331
        %1333 = vmatmul.f32.gmra.mxu0 %v911
        %v1334 = vpop.f32.mrf.mxu0
        %v1335 = vadd.f32 %v1222, %v1334
        %1336 = vmatmul.f32.gmra.mxu0 %v915
        %v1337 = vpop.f32.mrf.mxu0
        %v1338 = vadd.f32 %v1225, %v1337
        %1339 = vmatmul.f32.gmra.mxu0 %v919
        %v1340 = vpop.f32.mrf.mxu0
        %v1341 = vadd.f32 %v1228, %v1340
        %1342 = vmatmul.f32.gmra.mxu0 %v923
        %v1343 = vpop.f32.mrf.mxu0
        %v1344 = vadd.f32 %v1231, %v1343
        %1345 = vmatmul.f32.gmra.mxu0 %v927
        %v1346 = vpop.f32.mrf.mxu0
        %v1347 = vadd.f32 %v1234, %v1346
        %1348 = vmatmul.f32.gmra.mxu0 %v931
        %v1349 = vpop.f32.mrf.mxu0
        %v1350 = vadd.f32 %v1237, %v1349
        %1351 = vmatmul.f32.gmra.mxu0 %v935
        %v1352 = vpop.f32.mrf.mxu0
        %v1353 = vadd.f32 %v1240, %v1352
        %1354 = vmatmul.f32.gmra.mxu0 %v939
        %v1355 = vpop.f32.mrf.mxu0
        %v1356 = vadd.f32 %v1243, %v1355
        %1357 = vmatmul.f32.gmra.mxu0 %v943
        %v1358 = vpop.f32.mrf.mxu0
        %v1359 = vadd.f32 %v1246, %v1358
        %1360 = vmatmul.f32.gmra.mxu0 %v947
        %v1361 = vpop.f32.mrf.mxu0
        %v1362 = vadd.f32 %v1249, %v1361
        %1363 = vmatmul.f32.gmra.mxu0 %v951
        %v1364 = vpop.f32.mrf.mxu0
        %v1365 = vadd.f32 %v1252, %v1364
        %1366 = vmatmul.f32.gmra.mxu0 %v955
        %v1367 = vpop.f32.mrf.mxu0
        %v1368 = vadd.f32 %v1255, %v1367
        %1369 = vmatmul.f32.gmra.mxu0 %v959
        %v1370 = vpop.f32.mrf.mxu0
        %v1371 = vadd.f32 %v1258, %v1370
        %1372 = vmatmul.f32.gmra.mxu0 %v963
        %v1373 = vpop.f32.mrf.mxu0
        %v1374 = vadd.f32 %v1261, %v1373
        %1375 = vmatmul.f32.gmra.mxu0 %v967
        %v1376 = vpop.f32.mrf.mxu0
        %v1377 = vadd.f32 %v1264, %v1376
        %1378 = vmatmul.f32.gmra.mxu0 %v971
        %v1379 = vpop.f32.mrf.mxu0
        %v1380 = vadd.f32 %v1267, %v1379
        %1381 = vmatmul.f32.gmra.mxu0 %v975
        %v1382 = vpop.f32.mrf.mxu0
        %v1383 = vadd.f32 %v1270, %v1382
        %1384 = vmatmul.f32.gmra.mxu0 %v979
        %v1385 = vpop.f32.mrf.mxu0
        %v1386 = vadd.f32 %v1273, %v1385
        %1387 = vdwg.mxu0
        %1388 = vmatpush.msra.mxu0 %v1044
        %1389 = vmatpush.msra.mxu0 %v1043
        %1390 = vmatpush.msra.mxu0 %v1042
        %1391 = vmatpush.msra.mxu0 %v1041
        %1392 = vmatpush.msra.mxu0 %v1040
        %1393 = vmatpush.msra.mxu0 %v1039
        %1394 = vmatpush.msra.mxu0 %v1038
        %1395 = vmatpush.msra.mxu0 %v1037
        %1396 = vmatpush.msra.mxu0 %v1036
        %1397 = vmatpush.msra.mxu0 %v1035
        %1398 = vmatpush.msra.mxu0 %v1034
        %1399 = vmatpush.msra.mxu0 %v1033
        %1400 = vmatpush.msra.mxu0 %v1032
        %1401 = vmatpush.msra.mxu0 %v1031
        %1402 = vmatpush.msra.mxu0 %v1030
        %1403 = vmatpush.msra.mxu0 %v1029
        %1404 = vmatmul.f32.gmra.mxu0 %v856
        %v1405 = vpop.f32.mrf.mxu0
        %v1406 = vadd.f32 %v1293, %v1405
        %1407 = vmatmul.f32.gmra.mxu0 %v860
        %v1408 = vpop.f32.mrf.mxu0
        %v1409 = vadd.f32 %v1296, %v1408
        %1410 = vmatmul.f32.gmra.mxu0 %v864
        %v1411 = vpop.f32.mrf.mxu0
        %v1412 = vadd.f32 %v1299, %v1411
        %1413 = vmatmul.f32.gmra.mxu0 %v868
        %v1414 = vpop.f32.mrf.mxu0
        %v1415 = vadd.f32 %v1302, %v1414
        %1416 = vmatmul.f32.gmra.mxu0 %v872
        %v1417 = vpop.f32.mrf.mxu0
        %v1418 = vadd.f32 %v1305, %v1417
        %1419 = vmatmul.f32.gmra.mxu0 %v876
        %v1420 = vpop.f32.mrf.mxu0
        %v1421 = vadd.f32 %v1308, %v1420
        %1422 = vmatmul.f32.gmra.mxu0 %v880
        %v1423 = vpop.f32.mrf.mxu0
        %v1424 = vadd.f32 %v1311, %v1423
        %1425 = vmatmul.f32.gmra.mxu0 %v884
        %v1426 = vpop.f32.mrf.mxu0
        %v1427 = vadd.f32 %v1314, %v1426
        %1428 = vmatmul.f32.gmra.mxu0 %v888
        %v1429 = vpop.f32.mrf.mxu0
        %v1430 = vadd.f32 %v1317, %v1429
        %1431 = vmatmul.f32.gmra.mxu0 %v892
        %v1432 = vpop.f32.mrf.mxu0
        %v1433 = vadd.f32 %v1320, %v1432
        %1434 = vmatmul.f32.gmra.mxu0 %v896
        %v1435 = vpop.f32.mrf.mxu0
        %v1436 = vadd.f32 %v1323, %v1435
        %1437 = vmatmul.f32.gmra.mxu0 %v900
        %v1438 = vpop.f32.mrf.mxu0
        %v1439 = vadd.f32 %v1326, %v1438
        %1440 = vmatmul.f32.gmra.mxu0 %v904
        %v1441 = vpop.f32.mrf.mxu0
        %v1442 = vadd.f32 %v1329, %v1441
        %1443 = vmatmul.f32.gmra.mxu0 %v908
        %v1444 = vpop.f32.mrf.mxu0
        %v1445 = vadd.f32 %v1332, %v1444
        %1446 = vmatmul.f32.gmra.mxu0 %v912
        %v1447 = vpop.f32.mrf.mxu0
        %v1448 = vadd.f32 %v1335, %v1447
        %1449 = vmatmul.f32.gmra.mxu0 %v916
        %v1450 = vpop.f32.mrf.mxu0
        %v1451 = vadd.f32 %v1338, %v1450
        %1452 = vmatmul.f32.gmra.mxu0 %v920
        %v1453 = vpop.f32.mrf.mxu0
        %v1454 = vadd.f32 %v1341, %v1453
        %1455 = vmatmul.f32.gmra.mxu0 %v924
        %v1456 = vpop.f32.mrf.mxu0
        %v1457 = vadd.f32 %v1344, %v1456
        %1458 = vmatmul.f32.gmra.mxu0 %v928
        %v1459 = vpop.f32.mrf.mxu0
        %v1460 = vadd.f32 %v1347, %v1459
        %1461 = vmatmul.f32.gmra.mxu0 %v932
        %v1462 = vpop.f32.mrf.mxu0
        %v1463 = vadd.f32 %v1350, %v1462
        %1464 = vmatmul.f32.gmra.mxu0 %v936
        %v1465 = vpop.f32.mrf.mxu0
        %v1466 = vadd.f32 %v1353, %v1465
        %1467 = vmatmul.f32.gmra.mxu0 %v940
        %v1468 = vpop.f32.mrf.mxu0
        %v1469 = vadd.f32 %v1356, %v1468
        %1470 = vmatmul.f32.gmra.mxu0 %v944
        %v1471 = vpop.f32.mrf.mxu0
        %v1472 = vadd.f32 %v1359, %v1471
        %1473 = vmatmul.f32.gmra.mxu0 %v948
        %v1474 = vpop.f32.mrf.mxu0
        %v1475 = vadd.f32 %v1362, %v1474
        %1476 = vmatmul.f32.gmra.mxu0 %v952
        %v1477 = vpop.f32.mrf.mxu0
        %v1478 = vadd.f32 %v1365, %v1477
        %1479 = vmatmul.f32.gmra.mxu0 %v956
        %v1480 = vpop.f32.mrf.mxu0
        %v1481 = vadd.f32 %v1368, %v1480
        %1482 = vmatmul.f32.gmra.mxu0 %v960
        %v1483 = vpop.f32.mrf.mxu0
        %v1484 = vadd.f32 %v1371, %v1483
        %1485 = vmatmul.f32.gmra.mxu0 %v964
        %v1486 = vpop.f32.mrf.mxu0
        %v1487 = vadd.f32 %v1374, %v1486
        %1488 = vmatmul.f32.gmra.mxu0 %v968
        %v1489 = vpop.f32.mrf.mxu0
        %v1490 = vadd.f32 %v1377, %v1489
        %1491 = vmatmul.f32.gmra.mxu0 %v972
        %v1492 = vpop.f32.mrf.mxu0
        %v1493 = vadd.f32 %v1380, %v1492
        %1494 = vmatmul.f32.gmra.mxu0 %v976
        %v1495 = vpop.f32.mrf.mxu0
        %v1496 = vadd.f32 %v1383, %v1495
        %1497 = vmatmul.f32.gmra.mxu0 %v980
        %v1498 = vpop.f32.mrf.mxu0
        %v1499 = vadd.f32 %v1386, %v1498
        %1500 = vdwg.mxu0
        %1501 = vst [vmem:[%s292] sm:$0xff] %v1406
        %1502 = vst [vmem:[%s292 + $0x8] sm:$0xff] %v1409
        %1503 = vst [vmem:[%s292 + $0x10] sm:$0xff] %v1412
        %1504 = vst [vmem:[%s292 + $0x18] sm:$0xff] %v1415
        %1505 = vst [vmem:[%s292 + $0x20] sm:$0xff] %v1418
        %1506 = vst [vmem:[%s292 + $0x28] sm:$0xff] %v1421
        %1507 = vst [vmem:[%s292 + $0x30] sm:$0xff] %v1424
        %1508 = vst [vmem:[%s292 + $0x38] sm:$0xff] %v1427
        %1509 = vst [vmem:[%s292 + $0x40] sm:$0xff] %v1430
        %1510 = vst [vmem:[%s292 + $0x48] sm:$0xff] %v1433
        %1511 = vst [vmem:[%s292 + $0x50] sm:$0xff] %v1436
        %1512 = vst [vmem:[%s292 + $0x58] sm:$0xff] %v1439
        %1513 = vst [vmem:[%s292 + $0x60] sm:$0xff] %v1442
        %1514 = vst [vmem:[%s292 + $0x68] sm:$0xff] %v1445
        %1515 = vst [vmem:[%s292 + $0x70] sm:$0xff] %v1448
        %1516 = vst [vmem:[%s292 + $0x78] sm:$0xff] %v1451
        %1517 = vst [vmem:[%s292 + $0x80] sm:$0xff] %v1454
        %1518 = vst [vmem:[%s292 + $0x88] sm:$0xff] %v1457
        %1519 = vst [vmem:[%s292 + $0x90] sm:$0xff] %v1460
        %1520 = vst [vmem:[%s292 + $0x98] sm:$0xff] %v1463
        %1521 = vst [vmem:[%s292 + $0xa0] sm:$0xff] %v1466
        %1522 = vst [vmem:[%s292 + $0xa8] sm:$0xff] %v1469
        %1523 = vst [vmem:[%s292 + $0xb0] sm:$0xff] %v1472
        %1524 = vst [vmem:[%s292 + $0xb8] sm:$0xff] %v1475
        %1525 = vst [vmem:[%s292 + $0xc0] sm:$0xff] %v1478
        %1526 = vst [vmem:[%s292 + $0xc8] sm:$0xff] %v1481
        %1527 = vst [vmem:[%s292 + $0xd0] sm:$0xff] %v1484
        %1528 = vst [vmem:[%s292 + $0xd8] sm:$0xff] %v1487
        %1529 = vst [vmem:[%s292 + $0xe0] sm:$0xff] %v1490
        %1530 = vst [vmem:[%s292 + $0xe8] sm:$0xff] %v1493
        %1531 = vst [vmem:[%s292 + $0xf0] sm:$0xff] %v1496
        %1532 = vst [vmem:[%s292 + $0xf8] sm:$0xff] %v1499
        %s1533 = sand.u32 %s142, 1
        %s1534 = scalar_lea.sflag [#allocation4], %s1533
        %s1535 = sand.u32 %s142, 1
        %s1536 = smul.addr %s1535, 256
        %s1537 = scalar_lea.vmem [#allocation10], %s1536
        // Predicated region
        $region57: #{tpu_custom_call.1} parent=39 // pred_check
          %p1538 = pneg %p152
        $region58: #{tpu_custom_call.1} parent=39 // pred_check_branch
          %1540 = sbr.rel (%p1538) target = $region60
        $region59: #{tpu_custom_call.1} parent=39 // pred_region
          %s1541 = smul.u32 32, %s24
          %1543 = vsyncadd %s1534, 0
          %s1544 = smul.addr %s1541, 8
          %s1545 = scalar_lea.hbm %s5, %s1544
          %s1546 = sshll.u32 %s1537, 4
          %s1547 = int_to_ptr.vmem [resolvable:$true] %s1546
          %s1548 = sshll.u32 %s1545, 4
          %s1549 = int_to_ptr.hbm [resolvable:$true] %s1548
          %1554 = dma.vmem_to_hbm [thread:$0]  %s1547, 4096, %s1549, %s1534, 128, 128, 8
        $region60: #{tpu_custom_call.1} parent=39 // pred_fallthru
          _
      $region40: #{tpu_custom_call.1} parent=5 // pred_fallthru
        _
      %p1555 = scmp.le.s32.totalorder 2, %s19
      // Predicated region
      $region61: #{tpu_custom_call.1} parent=5 // pred_check
        %p1556 = pneg %p1555
      $region62: #{tpu_custom_call.1} parent=5 // pred_check_branch
        %1558 = sbr.rel (%p1556) target = $region64
      $region63: #{tpu_custom_call.1} parent=5 // pred_region
        %s1559 = ssub.s32 %s19, 2
        // Predicated region
        $region65: #{tpu_custom_call.1} parent=63 // pred_check
          %p1560 = pneg %p158
        $region66: #{tpu_custom_call.1} parent=63 // pred_check_branch
          %1562 = sbr.rel (%p1560) target = $region68
        $region67: #{tpu_custom_call.1} parent=63 // pred_region
          %s1563 = sand.u32 %s143, 1
          %s1564 = scalar_lea.sflag [#allocation4], %s1563
          %s1565 = sand.u32 %s143, 1
          %s1566 = smul.addr %s1565, 256
          %s1567 = scalar_lea.vmem [#allocation10], %s1566
          %1569 = dma.done %s1564, 4096
        $region68: #{tpu_custom_call.1} parent=63 // pred_fallthru
          _
      $region64: #{tpu_custom_call.1} parent=5 // pred_fallthru
        _
    $region6: #{tpu_custom_call.1} parent=1 // loop_footer
      %s23 = sadd.s32 1, %s19
    $region7: #{tpu_custom_call.1} parent=1 // loop_footer_branch
      %18 = sbr.rel target = $region3
    $region8: #{tpu_custom_call.1} parent=1 // loop_exit
      _
    %1570 = vsyncpa [#allocation3], 1
    %s1571 = scalar_lea.sflag [#allocation3], 1
    %1572 = vsyncpa %s1571, 1
    %1573 = vsyncpa [#allocation6], 1
    %1574 = vsyncpa [#allocation9], 1
    %1575 = vsyncpa [#allocation4], 1
    %s1576 = scalar_lea.sflag [#allocation4], 1
    %1577 = vsyncpa %s1576, 1

</llo_original>
